<compile_context>
chip_gen: v7x
topology: tpu7x:2x2x1
jax: 0.10.0
libtpu: 0.0.40
codegen_flags: <defaults>
</compile_context>

<pallas_src>
import math

import jax
import jax.numpy as jnp
from jax.experimental import pallas as pl
from jax.experimental.pallas import tpu as pltpu


def _round_up(x: int, m: int) -> int:
    return (x + m - 1) // m * m


def _mlp_kernel(x_ref, w1_ref, b1_ref, w2_ref, b2_ref, w3_ref, b3_ref, o_ref):
    # Cast x in-kernel (avoids a separate wrapper-side cast pass over HBM);
    # all three dots accumulate in f32 on the MXU.
    x = x_ref[...].astype(w1_ref.dtype)
    # fc1 + ReLU
    h1 = jnp.dot(x, w1_ref[...], preferred_element_type=jnp.float32)
    h1 = jnp.maximum(h1 + b1_ref[...], 0.0)
    # fc2 + ReLU
    h2 = jnp.dot(h1.astype(w2_ref.dtype), w2_ref[...],
                 preferred_element_type=jnp.float32)
    h2 = jnp.maximum(h2 + b2_ref[...], 0.0)
    # fc3 (no activation)
    out = jnp.dot(h2.astype(w3_ref.dtype), w3_ref[...],
                  preferred_element_type=jnp.float32) + b3_ref[...]
    o_ref[...] = out.astype(o_ref.dtype)


def prepare_mlp_params(params, compute_dtype=jnp.bfloat16):
    """Pad hidden/class dims to lane multiples (128) and cast weights to the
    compute dtype ONCE.  Hoist this call out of a training/eval loop so the
    per-step forward pass skips the pad/convert XLA ops."""
    F, H = params["w1"].shape
    C = params["w3"].shape[1]
    H_pad = _round_up(H, 128)
    C_pad = _round_up(C, 128)

    def pad2(a, rows, cols):
        return jnp.pad(a, ((0, rows - a.shape[0]), (0, cols - a.shape[1])))

    return {
        "_prepared": True,
        # Static python-int metadata used for tiling / output slicing.
        "dims": (F, H, C, H_pad, C_pad),
        "w1": pad2(params["w1"], F, H_pad).astype(compute_dtype),
        "b1": pad2(params["b1"], 1, H_pad).astype(jnp.float32),
        "w2": pad2(params["w2"], H_pad, H_pad).astype(compute_dtype),
        "b2": pad2(params["b2"], 1, H_pad).astype(jnp.float32),
        "w3": pad2(params["w3"], H_pad, C_pad).astype(compute_dtype),
        "b3": pad2(params["b3"], 1, C_pad).astype(jnp.float32),
    }


def mlp_forward(x, params, *, block_rows: int = 1024):
    """Run the 2NN MLP forward pass.

    x: (B, C, H, W) or (B, F); any float dtype (cast in-kernel to the weight
       compute dtype, f32 accumulation on the MXU).
    params: raw {"w1","b1",...} dict (weights stored as (in, out), i.e. the
       transpose of torch's Linear.weight) or output of prepare_mlp_params().
    Returns (B, class_num) float32 logits.
    """
    if x.ndim == 4:
        x = x.reshape(x.shape[0], -1)          # torch .view(B, -1)

    if not (isinstance(params, dict) and params.get("_prepared", False)):
        params = prepare_mlp_params(params)
    F, H, C, H_pad, C_pad = params["dims"]

    B = x.shape[0]
    assert x.shape[1] == F, (x.shape, F)

    # Pad B only to a sublane multiple (8); partial last grid blocks are fine.
    B_pad = _round_up(B, 8)
    if B_pad != B:
        x = jnp.pad(x, ((0, B_pad - B), (0, 0)))

    tm = min(block_rows, B_pad)
    # v7x megacore: keep >= 2 grid steps so the "parallel" batch axis can be
    # sharded across the two TensorCores (no-op on v5e/v6e, 1 TC).
    if B_pad > 8 and pl.cdiv(B_pad, tm) < 2:
        tm = _round_up(pl.cdiv(B_pad, 2), 8)
    grid = (pl.cdiv(B_pad, tm),)

    w1, b1 = params["w1"], params["b1"]
    w2, b2 = params["w2"], params["b2"]
    w3, b3 = params["w3"], params["b3"]
    w_itemsize = jnp.dtype(w1.dtype).itemsize
    x_itemsize = jnp.dtype(x.dtype).itemsize

    def vmem_limit(weight_buffers: int) -> int:
        # x/out tiles double-buffered, weights single- or double-buffered,
        # plus f32 intermediates (h1, h2) and slack for compiler scratch.
        need = (2 * tm * F * x_itemsize
                + 2 * tm * C_pad * 4
                + weight_buffers * (F * H_pad + H_pad * H_pad
                                    + H_pad * C_pad) * w_itemsize
                + weight_buffers * (2 * H_pad + C_pad) * 4
                + 3 * tm * H_pad * 4)
        return max(_round_up(need * 3 // 2 + (4 << 20), 1 << 20), 16 << 20)

    flops = 2 * B_pad * (F * H_pad + H_pad * H_pad + H_pad * C_pad)
    bytes_accessed = (B_pad * F * x_itemsize
                      + (w1.size + w2.size + w3.size) * w_itemsize
                      + (b1.size + b2.size + b3.size) * 4
                      + B_pad * C_pad * 4)

    def build(single_buffer_weights: bool):
        if single_buffer_weights:
            def resident(shape):
                # Constant block index -> fetched once; a single buffer is
                # enough and frees VMEM headroom for the larger batch tile.
                return pl.BlockSpec(shape, lambda i: (0,) * len(shape),
                                    pipeline_mode=pl.Buffered(1))
        else:
            def resident(shape):
                return pl.BlockSpec(shape, lambda i: (0,) * len(shape))

        return pl.pallas_call(
            _mlp_kernel,
            out_shape=jax.ShapeDtypeStruct((B_pad, C_pad), jnp.float32),
            grid=grid,
            in_specs=[
                pl.BlockSpec((tm, F), lambda i: (i, 0)),   # x: tiled over batch
                resident((F, H_pad)),                      # w1 (resident)
                resident((1, H_pad)),                      # b1
                resident((H_pad, H_pad)),                  # w2
                resident((1, H_pad)),                      # b2
                resident((H_pad, C_pad)),                  # w3
                resident((1, C_pad)),                      # b3
            ],
            out_specs=pl.BlockSpec((tm, C_pad), lambda i: (i, 0)),
            compiler_params=pltpu.CompilerParams(
                dimension_semantics=("parallel",),         # megacore on v7x
                vmem_limit_bytes=vmem_limit(1 if single_buffer_weights else 2),
            ),
            cost_estimate=pl.CostEstimate(
                flops=flops, transcendentals=0,
                bytes_accessed=bytes_accessed),
        )

    try:
        out_pad = build(True)(x, w1, b1, w2, b2, w3, b3)
    except Exception:
        # This JAX build rejected pipeline_mode=pl.Buffered(1); fall back to
        # default double-buffered weights (costs ~0.7 MiB extra VMEM only).
        out_pad = build(False)(x, w1, b1, w2, b2, w3, b3)

    # Slice away batch / class padding.
    return out_pad[:B, :C]


def init_mlp_params(key, in_features, class_num, hidden_dim=200,
                    dtype=jnp.float32):
    """Deterministic init mimicking torch.nn.Linear defaults:
    U(-1/sqrt(fan_in), 1/sqrt(fan_in)) for both weight and bias.
    Weights stored as (in_features, out_features) == torch weight.T."""
    keys = jax.random.split(key, 6)

    def linear(wk, bk, fan_in, fan_out):
        bound = 1.0 / math.sqrt(fan_in)
        w = jax.random.uniform(wk, (fan_in, fan_out), dtype, -bound, bound)
        b = jax.random.uniform(bk, (1, fan_out), dtype, -bound, bound)
        return w, b

    w1, b1 = linear(keys[0], keys[1], in_features, hidden_dim)
    w2, b2 = linear(keys[2], keys[3], hidden_dim, hidden_dim)
    w3, b3 = linear(keys[4], keys[5], hidden_dim, class_num)
    return {"w1": w1, "b1": b1, "w2": w2, "b2": b2, "w3": w3, "b3": b3}


if __name__ == "__main__":
    key = jax.random.PRNGKey(0)
    k_x, k_p = jax.random.split(key)

    # Small, module-consistent shapes: batch=2, 4-channel 16x16 "image"
    B, C, H, W = 2, 4, 16, 16
    in_features = C * H * W      # 1024
    class_num = 10
    hidden_dim = 200             # module default

    x = jax.random.normal(k_x, (B, C, H, W), dtype=jnp.float32)
    params = init_mlp_params(k_p, in_features, class_num, hidden_dim)

    # Hoist the (one-off) weight pad/cast out of the forward call.
    prepared = prepare_mlp_params(params)

    out = mlp_forward(x, prepared)
    jax.block_until_ready(out)
    assert out.shape == (B, class_num)

    xf = x.reshape(B, -1)
    bf = jnp.bfloat16

    # Matched-precision reference (bf16 operands, f32 accumulation).
    h1 = jnp.maximum(jnp.dot(xf.astype(bf), params["w1"].astype(bf),
                             preferred_element_type=jnp.float32)
                     + params["b1"], 0.0)
    h2 = jnp.maximum(jnp.dot(h1.astype(bf), params["w2"].astype(bf),
                             preferred_element_type=jnp.float32)
                     + params["b2"], 0.0)
    ref_bf16 = jnp.dot(h2.astype(bf), params["w3"].astype(bf),
                       preferred_element_type=jnp.float32) + params["b3"]
    assert jnp.allclose(out, ref_bf16, atol=2e-3, rtol=2e-3)

    # Full-f32 spec reference (loose tolerance: kernel uses bf16 operands).
    h1f = jnp.maximum(xf @ params["w1"] + params["b1"], 0.0)
    h2f = jnp.maximum(h1f @ params["w2"] + params["b2"], 0.0)
    ref_f32 = h2f @ params["w3"] + params["b3"]
    assert jnp.allclose(out, ref_f32, atol=5e-2, rtol=5e-2)

    print("KERNEL_OK")
</pallas_src>

<mosaic_0001>
module attributes {stable_mosaic.version = 11 : i64} {
  func.func @_mlp_kernel(%arg0: i32, %arg1: memref<8x1024xf32, #tpu.memory_space<vmem>>, %arg2: memref<1024x256xbf16, #tpu.memory_space<vmem>>, %arg3: memref<1x256xf32, #tpu.memory_space<vmem>>, %arg4: memref<256x256xbf16, #tpu.memory_space<vmem>>, %arg5: memref<1x256xf32, #tpu.memory_space<vmem>>, %arg6: memref<256x128xbf16, #tpu.memory_space<vmem>>, %arg7: memref<1x128xf32, #tpu.memory_space<vmem>>, %arg8: memref<8x128xf32, #tpu.memory_space<vmem>>) attributes {dimension_semantics = [#tpu.dimension_semantics<parallel>], iteration_bounds = array<i64: 1>, scalar_prefetch = 0 : i64, scratch_operands = 0 : i64, tpu.core_type = #tpu.core_type<tc>, window_params = [{transform_indices = @transform_0, window_bounds = array<i64: 8, 1024>}, {pipeline_mode = #tpu.pipeline_mode<synchronous>, transform_indices = @transform_1, window_bounds = array<i64: 1024, 256>}, {pipeline_mode = #tpu.pipeline_mode<synchronous>, transform_indices = @transform_2, window_bounds = array<i64: 1, 256>}, {pipeline_mode = #tpu.pipeline_mode<synchronous>, transform_indices = @transform_3, window_bounds = array<i64: 256, 256>}, {pipeline_mode = #tpu.pipeline_mode<synchronous>, transform_indices = @transform_4, window_bounds = array<i64: 1, 256>}, {pipeline_mode = #tpu.pipeline_mode<synchronous>, transform_indices = @transform_5, window_bounds = array<i64: 256, 128>}, {pipeline_mode = #tpu.pipeline_mode<synchronous>, transform_indices = @transform_6, window_bounds = array<i64: 1, 128>}, {transform_indices = @transform_7, window_bounds = array<i64: 8, 128>}]} {
    %c0 = arith.constant 0 : index
    %c0_0 = arith.constant 0 : index
    %0 = vector.load %arg1[%c0, %c0_0] : memref<8x1024xf32, #tpu.memory_space<vmem>>, vector<8x1024xf32>
    %1 = arith.truncf %0 : vector<8x1024xf32> to vector<8x1024xbf16>
    %c0_1 = arith.constant 0 : index
    %c0_2 = arith.constant 0 : index
    %2 = vector.load %arg2[%c0_1, %c0_2] : memref<1024x256xbf16, #tpu.memory_space<vmem>>, vector<1024x256xbf16>
    %cst = arith.constant dense<0.000000e+00> : vector<8x256xf32>
    %3 = tpu.matmul %1, %2, %cst {dimension_numbers = #tpu.dot_dimension_numbers<[1], [0], [0], [1], [0, 0, 1, 1], [], []>} : vector<8x1024xbf16>, vector<1024x256xbf16>, vector<8x256xf32> -> vector<8x256xf32>
    %c0_3 = arith.constant 0 : index
    %c0_4 = arith.constant 0 : index
    %4 = vector.load %arg3[%c0_3, %c0_4] : memref<1x256xf32, #tpu.memory_space<vmem>>, vector<1x256xf32>
    %5 = vector.broadcast %4 : vector<1x256xf32> to vector<8x256xf32>
    %6 = arith.addf %3, %5 : vector<8x256xf32>
    %cst_5 = arith.constant 0.000000e+00 : f32
    %7 = vector.broadcast %cst_5 : f32 to vector<8x256xf32>
    %8 = arith.maximumf %6, %7 : vector<8x256xf32>
    %9 = arith.truncf %8 : vector<8x256xf32> to vector<8x256xbf16>
    %c0_6 = arith.constant 0 : index
    %c0_7 = arith.constant 0 : index
    %10 = vector.load %arg4[%c0_6, %c0_7] : memref<256x256xbf16, #tpu.memory_space<vmem>>, vector<256x256xbf16>
    %cst_8 = arith.constant dense<0.000000e+00> : vector<8x256xf32>
    %11 = tpu.matmul %9, %10, %cst_8 {dimension_numbers = #tpu.dot_dimension_numbers<[1], [0], [0], [1], [0, 0, 1, 1], [], []>} : vector<8x256xbf16>, vector<256x256xbf16>, vector<8x256xf32> -> vector<8x256xf32>
    %c0_9 = arith.constant 0 : index
    %c0_10 = arith.constant 0 : index
    %12 = vector.load %arg5[%c0_9, %c0_10] : memref<1x256xf32, #tpu.memory_space<vmem>>, vector<1x256xf32>
    %13 = vector.broadcast %12 : vector<1x256xf32> to vector<8x256xf32>
    %14 = arith.addf %11, %13 : vector<8x256xf32>
    %cst_11 = arith.constant 0.000000e+00 : f32
    %15 = vector.broadcast %cst_11 : f32 to vector<8x256xf32>
    %16 = arith.maximumf %14, %15 : vector<8x256xf32>
    %17 = arith.truncf %16 : vector<8x256xf32> to vector<8x256xbf16>
    %c0_12 = arith.constant 0 : index
    %c0_13 = arith.constant 0 : index
    %18 = vector.load %arg6[%c0_12, %c0_13] : memref<256x128xbf16, #tpu.memory_space<vmem>>, vector<256x128xbf16>
    %cst_14 = arith.constant dense<0.000000e+00> : vector<8x128xf32>
    %19 = tpu.matmul %17, %18, %cst_14 {dimension_numbers = #tpu.dot_dimension_numbers<[1], [0], [0], [1], [0, 0, 1, 1], [], []>} : vector<8x256xbf16>, vector<256x128xbf16>, vector<8x128xf32> -> vector<8x128xf32>
    %c0_15 = arith.constant 0 : index
    %c0_16 = arith.constant 0 : index
    %20 = vector.load %arg7[%c0_15, %c0_16] : memref<1x128xf32, #tpu.memory_space<vmem>>, vector<1x128xf32>
    %21 = vector.broadcast %20 : vector<1x128xf32> to vector<8x128xf32>
    %22 = arith.addf %19, %21 : vector<8x128xf32>
    %c0_17 = arith.constant 0 : index
    %c0_18 = arith.constant 0 : index
    %23 = vector.load %arg8[%c0_17, %c0_18] : memref<8x128xf32, #tpu.memory_space<vmem>>, vector<8x128xf32>
    tpu.vector_store %arg8[%c0_17, %c0_18], %22 {strides = array<i32>} : memref<8x128xf32, #tpu.memory_space<vmem>>, vector<8x128xf32>,
    return
  }
  func.func @transform_0(%arg0: i32) -> (i32, i32) {
    %c0_i32 = arith.constant 0 : i32
    %c0_i32_0 = arith.constant 0 : i32
    return %arg0, %c0_i32 : i32, i32
  }
  func.func @transform_1(%arg0: i32) -> (i32, i32) {
    %c0_i32 = arith.constant 0 : i32
    %c0_i32_0 = arith.constant 0 : i32
    %c0_i32_1 = arith.constant 0 : i32
    return %c0_i32, %c0_i32_0 : i32, i32
  }
  func.func @transform_2(%arg0: i32) -> (i32, i32) {
    %c0_i32 = arith.constant 0 : i32
    %c0_i32_0 = arith.constant 0 : i32
    %c0_i32_1 = arith.constant 0 : i32
    return %c0_i32, %c0_i32_0 : i32, i32
  }
  func.func @transform_3(%arg0: i32) -> (i32, i32) {
    %c0_i32 = arith.constant 0 : i32
    %c0_i32_0 = arith.constant 0 : i32
    %c0_i32_1 = arith.constant 0 : i32
    return %c0_i32, %c0_i32_0 : i32, i32
  }
  func.func @transform_4(%arg0: i32) -> (i32, i32) {
    %c0_i32 = arith.constant 0 : i32
    %c0_i32_0 = arith.constant 0 : i32
    %c0_i32_1 = arith.constant 0 : i32
    return %c0_i32, %c0_i32_0 : i32, i32
  }
  func.func @transform_5(%arg0: i32) -> (i32, i32) {
    %c0_i32 = arith.constant 0 : i32
    %c0_i32_0 = arith.constant 0 : i32
    %c0_i32_1 = arith.constant 0 : i32
    return %c0_i32, %c0_i32_0 : i32, i32
  }
  func.func @transform_6(%arg0: i32) -> (i32, i32) {
    %c0_i32 = arith.constant 0 : i32
    %c0_i32_0 = arith.constant 0 : i32
    %c0_i32_1 = arith.constant 0 : i32
    return %c0_i32, %c0_i32_0 : i32, i32
  }
  func.func @transform_7(%arg0: i32) -> (i32, i32) {
    %c0_i32 = arith.constant 0 : i32
    %c0_i32_0 = arith.constant 0 : i32
    return %arg0, %c0_i32 : i32, i32
  }
}

module attributes {stable_mosaic.version = 11 : i64} {
  func.func @_mlp_kernel(%arg0: i32, %arg1: memref<8x1024xf32, #tpu.memory_space<vmem>>, %arg2: memref<1024x256xbf16, #tpu.memory_space<vmem>>, %arg3: memref<1x256xf32, #tpu.memory_space<vmem>>, %arg4: memref<256x256xbf16, #tpu.memory_space<vmem>>, %arg5: memref<1x256xf32, #tpu.memory_space<vmem>>, %arg6: memref<256x128xbf16, #tpu.memory_space<vmem>>, %arg7: memref<1x128xf32, #tpu.memory_space<vmem>>, %arg8: memref<8x128xf32, #tpu.memory_space<vmem>>) attributes {dimension_semantics = [#tpu.dimension_semantics<parallel>], iteration_bounds = array<i64: 1>, scalar_prefetch = 0 : i64, scratch_operands = 0 : i64, tpu.core_type = #tpu.core_type<tc>, window_params = [{transform_indices = @transform_0, window_bounds = array<i64: 8, 1024>}, {pipeline_mode = #tpu.pipeline_mode<synchronous>, transform_indices = @transform_1, window_bounds = array<i64: 1024, 256>}, {pipeline_mode = #tpu.pipeline_mode<synchronous>, transform_indices = @transform_2, window_bounds = array<i64: 1, 256>}, {pipeline_mode = #tpu.pipeline_mode<synchronous>, transform_indices = @transform_3, window_bounds = array<i64: 256, 256>}, {pipeline_mode = #tpu.pipeline_mode<synchronous>, transform_indices = @transform_4, window_bounds = array<i64: 1, 256>}, {pipeline_mode = #tpu.pipeline_mode<synchronous>, transform_indices = @transform_5, window_bounds = array<i64: 256, 128>}, {pipeline_mode = #tpu.pipeline_mode<synchronous>, transform_indices = @transform_6, window_bounds = array<i64: 1, 128>}, {transform_indices = @transform_7, window_bounds = array<i64: 8, 128>}]} {
    %c0 = arith.constant 0 : index
    %c0_0 = arith.constant 0 : index
    %0 = vector.load %arg1[%c0, %c0_0] : memref<8x1024xf32, #tpu.memory_space<vmem>>, vector<8x1024xf32>
    %1 = arith.truncf %0 : vector<8x1024xf32> to vector<8x1024xbf16>
    %c0_1 = arith.constant 0 : index
    %c0_2 = arith.constant 0 : index
    %2 = vector.load %arg2[%c0_1, %c0_2] : memref<1024x256xbf16, #tpu.memory_space<vmem>>, vector<1024x256xbf16>
    %cst = arith.constant dense<0.000000e+00> : vector<8x256xf32>
    %3 = tpu.matmul %1, %2, %cst {dimension_numbers = #tpu.dot_dimension_numbers<[1], [0], [0], [1], [0, 0, 1, 1], [], []>} : vector<8x1024xbf16>, vector<1024x256xbf16>, vector<8x256xf32> -> vector<8x256xf32>
    %c0_3 = arith.constant 0 : index
    %c0_4 = arith.constant 0 : index
    %4 = vector.load %arg3[%c0_3, %c0_4] : memref<1x256xf32, #tpu.memory_space<vmem>>, vector<1x256xf32>
    %5 = vector.broadcast %4 : vector<1x256xf32> to vector<8x256xf32>
    %6 = arith.addf %3, %5 : vector<8x256xf32>
    %cst_5 = arith.constant 0.000000e+00 : f32
    %7 = vector.broadcast %cst_5 : f32 to vector<8x256xf32>
    %8 = arith.maximumf %6, %7 : vector<8x256xf32>
    %9 = arith.truncf %8 : vector<8x256xf32> to vector<8x256xbf16>
    %c0_6 = arith.constant 0 : index
    %c0_7 = arith.constant 0 : index
    %10 = vector.load %arg4[%c0_6, %c0_7] : memref<256x256xbf16, #tpu.memory_space<vmem>>, vector<256x256xbf16>
    %cst_8 = arith.constant dense<0.000000e+00> : vector<8x256xf32>
    %11 = tpu.matmul %9, %10, %cst_8 {dimension_numbers = #tpu.dot_dimension_numbers<[1], [0], [0], [1], [0, 0, 1, 1], [], []>} : vector<8x256xbf16>, vector<256x256xbf16>, vector<8x256xf32> -> vector<8x256xf32>
    %c0_9 = arith.constant 0 : index
    %c0_10 = arith.constant 0 : index
    %12 = vector.load %arg5[%c0_9, %c0_10] : memref<1x256xf32, #tpu.memory_space<vmem>>, vector<1x256xf32>
    %13 = vector.broadcast %12 : vector<1x256xf32> to vector<8x256xf32>
    %14 = arith.addf %11, %13 : vector<8x256xf32>
    %cst_11 = arith.constant 0.000000e+00 : f32
    %15 = vector.broadcast %cst_11 : f32 to vector<8x256xf32>
    %16 = arith.maximumf %14, %15 : vector<8x256xf32>
    %17 = arith.truncf %16 : vector<8x256xf32> to vector<8x256xbf16>
    %c0_12 = arith.constant 0 : index
    %c0_13 = arith.constant 0 : index
    %18 = vector.load %arg6[%c0_12, %c0_13] : memref<256x128xbf16, #tpu.memory_space<vmem>>, vector<256x128xbf16>
    %cst_14 = arith.constant dense<0.000000e+00> : vector<8x128xf32>
    %19 = tpu.matmul %17, %18, %cst_14 {dimension_numbers = #tpu.dot_dimension_numbers<[1], [0], [0], [1], [0, 0, 1, 1], [], []>} : vector<8x256xbf16>, vector<256x128xbf16>, vector<8x128xf32> -> vector<8x128xf32>
    %c0_15 = arith.constant 0 : index
    %c0_16 = arith.constant 0 : index
    %20 = vector.load %arg7[%c0_15, %c0_16] : memref<1x128xf32, #tpu.memory_space<vmem>>, vector<1x128xf32>
    %21 = vector.broadcast %20 : vector<1x128xf32> to vector<8x128xf32>
    %22 = arith.addf %19, %21 : vector<8x128xf32>
    %c0_17 = arith.constant 0 : index
    %c0_18 = arith.constant 0 : index
    %23 = vector.load %arg8[%c0_17, %c0_18] : memref<8x128xf32, #tpu.memory_space<vmem>>, vector<8x128xf32>
    tpu.vector_store %arg8[%c0_17, %c0_18], %22 {strides = array<i32>} : memref<8x128xf32, #tpu.memory_space<vmem>>, vector<8x128xf32>,
    return
  }
  func.func @transform_0(%arg0: i32) -> (i32, i32) {
    %c0_i32 = arith.constant 0 : i32
    %c0_i32_0 = arith.constant 0 : i32
    return %arg0, %c0_i32 : i32, i32
  }
  func.func @transform_1(%arg0: i32) -> (i32, i32) {
    %c0_i32 = arith.constant 0 : i32
    %c0_i32_0 = arith.constant 0 : i32
    %c0_i32_1 = arith.constant 0 : i32
    return %c0_i32, %c0_i32_0 : i32, i32
  }
  func.func @transform_2(%arg0: i32) -> (i32, i32) {
    %c0_i32 = arith.constant 0 : i32
    %c0_i32_0 = arith.constant 0 : i32
    %c0_i32_1 = arith.constant 0 : i32
    return %c0_i32, %c0_i32_0 : i32, i32
  }
  func.func @transform_3(%arg0: i32) -> (i32, i32) {
    %c0_i32 = arith.constant 0 : i32
    %c0_i32_0 = arith.constant 0 : i32
    %c0_i32_1 = arith.constant 0 : i32
    return %c0_i32, %c0_i32_0 : i32, i32
  }
  func.func @transform_4(%arg0: i32) -> (i32, i32) {
    %c0_i32 = arith.constant 0 : i32
    %c0_i32_0 = arith.constant 0 : i32
    %c0_i32_1 = arith.constant 0 : i32
    return %c0_i32, %c0_i32_0 : i32, i32
  }
  func.func @transform_5(%arg0: i32) -> (i32, i32) {
    %c0_i32 = arith.constant 0 : i32
    %c0_i32_0 = arith.constant 0 : i32
    %c0_i32_1 = arith.constant 0 : i32
    return %c0_i32, %c0_i32_0 : i32, i32
  }
  func.func @transform_6(%arg0: i32) -> (i32, i32) {
    %c0_i32 = arith.constant 0 : i32
    %c0_i32_0 = arith.constant 0 : i32
    %c0_i32_1 = arith.constant 0 : i32
    return %c0_i32, %c0_i32_0 : i32, i32
  }
  func.func @transform_7(%arg0: i32) -> (i32, i32) {
    %c0_i32 = arith.constant 0 : i32
    %c0_i32_0 = arith.constant 0 : i32
    return %arg0, %c0_i32 : i32, i32
  }
}

</mosaic_0001>

<llo_original>
// kernel: tpu_custom_call.1
$region0: #{tpu_custom_call.1}
  #allocation0 [shape = 'u32[]', space=smem, size = 0x4, offset = 0x4, fixed_abs, tag = 'smem constant byte address 0x4 - core index']
  #allocation1 [shape = 'u32[144,128]{1,0:T(1,128)}', space=vmem, size = 0x12000, scoped, tag = 'internal scratch']
  %s0 = inlined_call_operand.hbm [shape: f32[8,1024], index: 0, kind: input, shape index: {}]
  %s1 = inlined_call_operand.hbm [shape: bf16[1024,256], index: 1, kind: input, shape index: {}]
  %s2 = inlined_call_operand.vmem [shape: f32[1,256], index: 2, kind: input, shape index: {}]
  %s3 = inlined_call_operand.hbm [shape: bf16[256,256], index: 3, kind: input, shape index: {}]
  %s4 = inlined_call_operand.vmem [shape: f32[1,256], index: 4, kind: input, shape index: {}]
  %s5 = inlined_call_operand.hbm [shape: bf16[256,128], index: 5, kind: input, shape index: {}]
  %s6 = inlined_call_operand.vmem [shape: f32[1,128], index: 6, kind: input, shape index: {}]
  %s7 = inlined_call_operand.hbm [shape: f32[8,128], index: 7, kind: output, shape index: {}]
  %s8 = sld [smem:[#allocation0]]
  $region54: #{tpu_custom_call.1} parent=0
    _
  %s10 = ssub.s32 1, %s8
  %s11 = scalar_select 0, %s10, %s8
  $region1: #{tpu_custom_call.1} parent=0
    #allocation2 [shape = 'u8[32768]{0}', space=vmem, size = 0x8000, scoped, tag = 'input window, operand 0, single buffered']
    #allocation3 [shape = 's32[1]{0}', space=sflag, size = 0x4, scoped, tag = 'scoped memory for tpu_custom_call.1']
    #allocation4 [shape = 's32[1]{0}', space=sflag, size = 0x4, scoped, tag = 'scoped memory for tpu_custom_call.1']
    #allocation5 [shape = 'u8[524288]{0}', space=vmem, size = 0x80000, scoped, tag = 'input window, operand 1, single buffered']
    #allocation6 [shape = 's32[1]{0}', space=sflag, size = 0x4, scoped, tag = 'scoped memory for tpu_custom_call.1']
    #allocation7 [shape = 'u8[131072]{0}', space=vmem, size = 0x20000, scoped, tag = 'input window, operand 3, single buffered']
    #allocation8 [shape = 'u8[65536]{0}', space=vmem, size = 0x10000, scoped, tag = 'input window, operand 5, single buffered']
    #allocation9 [shape = 's32[1]{0}', space=sflag, size = 0x4, scoped, tag = 'scoped memory for tpu_custom_call.1']
    #allocation10 [shape = 'u8[4096]{0}', space=vmem, size = 0x1000, scoped, tag = 'output window, operand 0, single buffered']
    %12 = vsyncpa [#allocation3], 0
    %13 = vsyncpa [#allocation6], 0
    %14 = vsyncpa [#allocation9], 0
    %15 = vsyncpa [#allocation4], 0
    // Predicated region
    $region2: #{tpu_custom_call.1} parent=1 // pred_check
      _
    $region3: #{tpu_custom_call.1} parent=1 // pred_check_branch
      %17 = sbr.rel (0) target = $region5
    $region4: #{tpu_custom_call.1} parent=1 // pred_region
      %s19 = ssub.s32 1024, 1024
      %20 = vsyncadd [#allocation3], %s19
      %s22 = sshll.u32 [#allocation2], 4
      %s23 = int_to_ptr.vmem [resolvable:$true] %s22
      %25 = dma.hbm_to_vmem [thread:$0]  %s0, 1024, %s23, [#allocation3]
    $region5: #{tpu_custom_call.1} parent=1 // pred_fallthru
      _
    // Predicated region
    $region6: #{tpu_custom_call.1} parent=1 // pred_check
      _
    $region7: #{tpu_custom_call.1} parent=1 // pred_check_branch
      %27 = sbr.rel (0) target = $region9
    $region8: #{tpu_custom_call.1} parent=1 // pred_region
      %s29 = ssub.s32 16384, 16384
      %30 = vsyncadd [#allocation6], %s29
      %s31 = sshll.u32 [#allocation5], 4
      %s32 = int_to_ptr.vmem [resolvable:$true] %s31
      %37 = dma.hbm_to_vmem [thread:$0]  %s1, 16384, %s32, [#allocation6], 128, 128, 8
    $region9: #{tpu_custom_call.1} parent=1 // pred_fallthru
      _
    // Predicated region
    $region10: #{tpu_custom_call.1} parent=1 // pred_check
      _
    $region11: #{tpu_custom_call.1} parent=1 // pred_check_branch
      %39 = sbr.rel (0) target = $region13
    $region12: #{tpu_custom_call.1} parent=1 // pred_region
      _
    $region13: #{tpu_custom_call.1} parent=1 // pred_fallthru
      _
    // Predicated region
    $region14: #{tpu_custom_call.1} parent=1 // pred_check
      _
    $region15: #{tpu_custom_call.1} parent=1 // pred_check_branch
      %41 = sbr.rel (0) target = $region17
    $region16: #{tpu_custom_call.1} parent=1 // pred_region
      %s43 = ssub.s32 4096, 4096
      %44 = vsyncadd [#allocation6], %s43
      %s45 = sshll.u32 [#allocation7], 4
      %s46 = int_to_ptr.vmem [resolvable:$true] %s45
      %51 = dma.hbm_to_vmem [thread:$0]  %s3, 4096, %s46, [#allocation6], 128, 128, 8
    $region17: #{tpu_custom_call.1} parent=1 // pred_fallthru
      _
    // Predicated region
    $region18: #{tpu_custom_call.1} parent=1 // pred_check
      _
    $region19: #{tpu_custom_call.1} parent=1 // pred_check_branch
      %53 = sbr.rel (0) target = $region21
    $region20: #{tpu_custom_call.1} parent=1 // pred_region
      _
    $region21: #{tpu_custom_call.1} parent=1 // pred_fallthru
      _
    // Predicated region
    $region22: #{tpu_custom_call.1} parent=1 // pred_check
      _
    $region23: #{tpu_custom_call.1} parent=1 // pred_check_branch
      %55 = sbr.rel (0) target = $region25
    $region24: #{tpu_custom_call.1} parent=1 // pred_region
      %s57 = ssub.s32 2048, 2048
      %58 = vsyncadd [#allocation9], %s57
      %s59 = sshll.u32 [#allocation8], 4
      %s60 = int_to_ptr.vmem [resolvable:$true] %s59
      %65 = dma.hbm_to_vmem [thread:$0]  %s5, 2048, %s60, [#allocation9], 64, 64, 4
    $region25: #{tpu_custom_call.1} parent=1 // pred_fallthru
      _
    // Predicated region
    $region26: #{tpu_custom_call.1} parent=1 // pred_check
      _
    $region27: #{tpu_custom_call.1} parent=1 // pred_check_branch
      %67 = sbr.rel (0) target = $region29
    $region28: #{tpu_custom_call.1} parent=1 // pred_region
      _
    $region29: #{tpu_custom_call.1} parent=1 // pred_fallthru
      _
    // Predicated region
    $region30: #{tpu_custom_call.1} parent=1 // pred_check
      _
    $region31: #{tpu_custom_call.1} parent=1 // pred_check_branch
      %69 = sbr.rel (0) target = $region33
    $region32: #{tpu_custom_call.1} parent=1 // pred_region
      %70 = dma.done [#allocation3], 1024
    $region33: #{tpu_custom_call.1} parent=1 // pred_fallthru
      _
    // Predicated region
    $region34: #{tpu_custom_call.1} parent=1 // pred_check
      _
    $region35: #{tpu_custom_call.1} parent=1 // pred_check_branch
      %72 = sbr.rel (0) target = $region37
    $region36: #{tpu_custom_call.1} parent=1 // pred_region
      %73 = dma.done [#allocation6], 16384
    $region37: #{tpu_custom_call.1} parent=1 // pred_fallthru
      _
    // Predicated region
    $region38: #{tpu_custom_call.1} parent=1 // pred_check
      _
    $region39: #{tpu_custom_call.1} parent=1 // pred_check_branch
      %75 = sbr.rel (0) target = $region41
    $region40: #{tpu_custom_call.1} parent=1 // pred_region
      %76 = dma.done [#allocation6], 4096
    $region41: #{tpu_custom_call.1} parent=1 // pred_fallthru
      _
    // Predicated region
    $region42: #{tpu_custom_call.1} parent=1 // pred_check
      _
    $region43: #{tpu_custom_call.1} parent=1 // pred_check_branch
      %78 = sbr.rel (0) target = $region45
    $region44: #{tpu_custom_call.1} parent=1 // pred_region
      %79 = dma.done [#allocation9], 2048
    $region45: #{tpu_custom_call.1} parent=1 // pred_fallthru
      _
    %v81 = vld [vmem:[#allocation2] sm:$0xff]
    %v82 = vld [vmem:[#allocation2 + $0x8] sm:$0xff]
    %v83 = vld [vmem:[#allocation2 + $0x10] sm:$0xff]
    %v84 = vld [vmem:[#allocation2 + $0x18] sm:$0xff]
    %v85 = vld [vmem:[#allocation2 + $0x20] sm:$0xff]
    %v86 = vld [vmem:[#allocation2 + $0x28] sm:$0xff]
    %v87 = vld [vmem:[#allocation2 + $0x30] sm:$0xff]
    %v88 = vld [vmem:[#allocation2 + $0x38] sm:$0xff]
    %v89 = vpack.c.bf16 %v81, %v81
    %v90 = vpack.c.bf16 %v82, %v82
    %v91 = vpack.c.bf16 %v83, %v83
    %v92 = vpack.c.bf16 %v84, %v84
    %v93 = vpack.c.bf16 %v85, %v85
    %v94 = vpack.c.bf16 %v86, %v86
    %v95 = vpack.c.bf16 %v87, %v87
    %v96 = vpack.c.bf16 %v88, %v88
    %v97 = vld [vmem:[#allocation5] sm:$0xff]
    %v98 = vld [vmem:[#allocation5 + $0x8] sm:$0xff]
    %v99 = vld [vmem:[#allocation5 + $0x10] sm:$0xff]
    %v100 = vld [vmem:[#allocation5 + $0x18] sm:$0xff]
    %v101 = vld [vmem:[#allocation5 + $0x20] sm:$0xff]
    %v102 = vld [vmem:[#allocation5 + $0x28] sm:$0xff]
    %v103 = vld [vmem:[#allocation5 + $0x30] sm:$0xff]
    %v104 = vld [vmem:[#allocation5 + $0x38] sm:$0xff]
    %v105 = vld [vmem:[#allocation5 + $0x40] sm:$0xff]
    %v106 = vld [vmem:[#allocation5 + $0x48] sm:$0xff]
    %v107 = vld [vmem:[#allocation5 + $0x50] sm:$0xff]
    %v108 = vld [vmem:[#allocation5 + $0x58] sm:$0xff]
    %v109 = vld [vmem:[#allocation5 + $0x60] sm:$0xff]
    %v110 = vld [vmem:[#allocation5 + $0x68] sm:$0xff]
    %v111 = vld [vmem:[#allocation5 + $0x70] sm:$0xff]
    %v112 = vld [vmem:[#allocation5 + $0x78] sm:$0xff]
    %v113 = vld [vmem:[#allocation5 + $0x80] sm:$0xff]
    %v114 = vld [vmem:[#allocation5 + $0x88] sm:$0xff]
    %v115 = vld [vmem:[#allocation5 + $0x90] sm:$0xff]
    %v116 = vld [vmem:[#allocation5 + $0x98] sm:$0xff]
    %v117 = vld [vmem:[#allocation5 + $0xa0] sm:$0xff]
    %v118 = vld [vmem:[#allocation5 + $0xa8] sm:$0xff]
    %v119 = vld [vmem:[#allocation5 + $0xb0] sm:$0xff]
    %v120 = vld [vmem:[#allocation5 + $0xb8] sm:$0xff]
    %v121 = vld [vmem:[#allocation5 + $0xc0] sm:$0xff]
    %v122 = vld [vmem:[#allocation5 + $0xc8] sm:$0xff]
    %v123 = vld [vmem:[#allocation5 + $0xd0] sm:$0xff]
    %v124 = vld [vmem:[#allocation5 + $0xd8] sm:$0xff]
    %v125 = vld [vmem:[#allocation5 + $0xe0] sm:$0xff]
    %v126 = vld [vmem:[#allocation5 + $0xe8] sm:$0xff]
    %v127 = vld [vmem:[#allocation5 + $0xf0] sm:$0xff]
    %v128 = vld [vmem:[#allocation5 + $0xf8] sm:$0xff]
    %v129 = vld [vmem:[#allocation5 + $0x100] sm:$0xff]
    %v130 = vld [vmem:[#allocation5 + $0x108] sm:$0xff]
    %v131 = vld [vmem:[#allocation5 + $0x110] sm:$0xff]
    %v132 = vld [vmem:[#allocation5 + $0x118] sm:$0xff]
    %v133 = vld [vmem:[#allocation5 + $0x120] sm:$0xff]
    %v134 = vld [vmem:[#allocation5 + $0x128] sm:$0xff]
    %v135 = vld [vmem:[#allocation5 + $0x130] sm:$0xff]
    %v136 = vld [vmem:[#allocation5 + $0x138] sm:$0xff]
    %v137 = vld [vmem:[#allocation5 + $0x140] sm:$0xff]
    %v138 = vld [vmem:[#allocation5 + $0x148] sm:$0xff]
    %v139 = vld [vmem:[#allocation5 + $0x150] sm:$0xff]
    %v140 = vld [vmem:[#allocation5 + $0x158] sm:$0xff]
    %v141 = vld [vmem:[#allocation5 + $0x160] sm:$0xff]
    %v142 = vld [vmem:[#allocation5 + $0x168] sm:$0xff]
    %v143 = vld [vmem:[#allocation5 + $0x170] sm:$0xff]
    %v144 = vld [vmem:[#allocation5 + $0x178] sm:$0xff]
    %v145 = vld [vmem:[#allocation5 + $0x180] sm:$0xff]
    %v146 = vld [vmem:[#allocation5 + $0x188] sm:$0xff]
    %v147 = vld [vmem:[#allocation5 + $0x190] sm:$0xff]
    %v148 = vld [vmem:[#allocation5 + $0x198] sm:$0xff]
    %v149 = vld [vmem:[#allocation5 + $0x1a0] sm:$0xff]
    %v150 = vld [vmem:[#allocation5 + $0x1a8] sm:$0xff]
    %v151 = vld [vmem:[#allocation5 + $0x1b0] sm:$0xff]
    %v152 = vld [vmem:[#allocation5 + $0x1b8] sm:$0xff]
    %v153 = vld [vmem:[#allocation5 + $0x1c0] sm:$0xff]
    %v154 = vld [vmem:[#allocation5 + $0x1c8] sm:$0xff]
    %v155 = vld [vmem:[#allocation5 + $0x1d0] sm:$0xff]
    %v156 = vld [vmem:[#allocation5 + $0x1d8] sm:$0xff]
    %v157 = vld [vmem:[#allocation5 + $0x1e0] sm:$0xff]
    %v158 = vld [vmem:[#allocation5 + $0x1e8] sm:$0xff]
    %v159 = vld [vmem:[#allocation5 + $0x1f0] sm:$0xff]
    %v160 = vld [vmem:[#allocation5 + $0x1f8] sm:$0xff]
    %v161 = vld [vmem:[#allocation5 + $0x200] sm:$0xff]
    %v162 = vld [vmem:[#allocation5 + $0x208] sm:$0xff]
    %v163 = vld [vmem:[#allocation5 + $0x210] sm:$0xff]
    %v164 = vld [vmem:[#allocation5 + $0x218] sm:$0xff]
    %v165 = vld [vmem:[#allocation5 + $0x220] sm:$0xff]
    %v166 = vld [vmem:[#allocation5 + $0x228] sm:$0xff]
    %v167 = vld [vmem:[#allocation5 + $0x230] sm:$0xff]
    %v168 = vld [vmem:[#allocation5 + $0x238] sm:$0xff]
    %v169 = vld [vmem:[#allocation5 + $0x240] sm:$0xff]
    %v170 = vld [vmem:[#allocation5 + $0x248] sm:$0xff]
    %v171 = vld [vmem:[#allocation5 + $0x250] sm:$0xff]
    %v172 = vld [vmem:[#allocation5 + $0x258] sm:$0xff]
    %v173 = vld [vmem:[#allocation5 + $0x260] sm:$0xff]
    %v174 = vld [vmem:[#allocation5 + $0x268] sm:$0xff]
    %v175 = vld [vmem:[#allocation5 + $0x270] sm:$0xff]
    %v176 = vld [vmem:[#allocation5 + $0x278] sm:$0xff]
    %v177 = vld [vmem:[#allocation5 + $0x280] sm:$0xff]
    %v178 = vld [vmem:[#allocation5 + $0x288] sm:$0xff]
    %v179 = vld [vmem:[#allocation5 + $0x290] sm:$0xff]
    %v180 = vld [vmem:[#allocation5 + $0x298] sm:$0xff]
    %v181 = vld [vmem:[#allocation5 + $0x2a0] sm:$0xff]
    %v182 = vld [vmem:[#allocation5 + $0x2a8] sm:$0xff]
    %v183 = vld [vmem:[#allocation5 + $0x2b0] sm:$0xff]
    %v184 = vld [vmem:[#allocation5 + $0x2b8] sm:$0xff]
    %v185 = vld [vmem:[#allocation5 + $0x2c0] sm:$0xff]
    %v186 = vld [vmem:[#allocation5 + $0x2c8] sm:$0xff]
    %v187 = vld [vmem:[#allocation5 + $0x2d0] sm:$0xff]
    %v188 = vld [vmem:[#allocation5 + $0x2d8] sm:$0xff]
    %v189 = vld [vmem:[#allocation5 + $0x2e0] sm:$0xff]
    %v190 = vld [vmem:[#allocation5 + $0x2e8] sm:$0xff]
    %v191 = vld [vmem:[#allocation5 + $0x2f0] sm:$0xff]
    %v192 = vld [vmem:[#allocation5 + $0x2f8] sm:$0xff]
    %v193 = vld [vmem:[#allocation5 + $0x300] sm:$0xff]
    %v194 = vld [vmem:[#allocation5 + $0x308] sm:$0xff]
    %v195 = vld [vmem:[#allocation5 + $0x310] sm:$0xff]
    %v196 = vld [vmem:[#allocation5 + $0x318] sm:$0xff]
    %v197 = vld [vmem:[#allocation5 + $0x320] sm:$0xff]
    %v198 = vld [vmem:[#allocation5 + $0x328] sm:$0xff]
    %v199 = vld [vmem:[#allocation5 + $0x330] sm:$0xff]
    %v200 = vld [vmem:[#allocation5 + $0x338] sm:$0xff]
    %v201 = vld [vmem:[#allocation5 + $0x340] sm:$0xff]
    %v202 = vld [vmem:[#allocation5 + $0x348] sm:$0xff]
    %v203 = vld [vmem:[#allocation5 + $0x350] sm:$0xff]
    %v204 = vld [vmem:[#allocation5 + $0x358] sm:$0xff]
    %v205 = vld [vmem:[#allocation5 + $0x360] sm:$0xff]
    %v206 = vld [vmem:[#allocation5 + $0x368] sm:$0xff]
    %v207 = vld [vmem:[#allocation5 + $0x370] sm:$0xff]
    %v208 = vld [vmem:[#allocation5 + $0x378] sm:$0xff]
    %v209 = vld [vmem:[#allocation5 + $0x380] sm:$0xff]
    %v210 = vld [vmem:[#allocation5 + $0x388] sm:$0xff]
    %v211 = vld [vmem:[#allocation5 + $0x390] sm:$0xff]
    %v212 = vld [vmem:[#allocation5 + $0x398] sm:$0xff]
    %v213 = vld [vmem:[#allocation5 + $0x3a0] sm:$0xff]
    %v214 = vld [vmem:[#allocation5 + $0x3a8] sm:$0xff]
    %v215 = vld [vmem:[#allocation5 + $0x3b0] sm:$0xff]
    %v216 = vld [vmem:[#allocation5 + $0x3b8] sm:$0xff]
    %v217 = vld [vmem:[#allocation5 + $0x3c0] sm:$0xff]
    %v218 = vld [vmem:[#allocation5 + $0x3c8] sm:$0xff]
    %v219 = vld [vmem:[#allocation5 + $0x3d0] sm:$0xff]
    %v220 = vld [vmem:[#allocation5 + $0x3d8] sm:$0xff]
    %v221 = vld [vmem:[#allocation5 + $0x3e0] sm:$0xff]
    %v222 = vld [vmem:[#allocation5 + $0x3e8] sm:$0xff]
    %v223 = vld [vmem:[#allocation5 + $0x3f0] sm:$0xff]
    %v224 = vld [vmem:[#allocation5 + $0x3f8] sm:$0xff]
    %v225 = vld [vmem:[%s2] sm:$0x3]
    %v227 = vlaneseq
    %v228 = vshrl.u32 %v227, 7
    %v229 = vsub.s32 0, %v228
    %v230 = vrot.slane %v225, %v229
    %v231 = vlaneseq
    %v232 = vshrl.u32 %v231, 7
    %v233 = vsub.s32 1, %v232
    %v234 = vrot.slane %v225, %v233
    %v365 = vunpack.c.l.b16 %v97
    %v366 = vunpack.c.h.b16 %v97
    %v367 = vunpack.c.l.b16 %v98
    %v368 = vunpack.c.h.b16 %v98
    %v369 = vunpack.c.l.b16 %v99
    %v370 = vunpack.c.h.b16 %v99
    %v371 = vunpack.c.l.b16 %v100
    %v372 = vunpack.c.h.b16 %v100
    %v373 = vunpack.c.l.b16 %v101
    %v374 = vunpack.c.h.b16 %v101
    %v375 = vunpack.c.l.b16 %v102
    %v376 = vunpack.c.h.b16 %v102
    %v377 = vunpack.c.l.b16 %v103
    %v378 = vunpack.c.h.b16 %v103
    %v379 = vunpack.c.l.b16 %v104
    %v380 = vunpack.c.h.b16 %v104
    %v381 = vunpack.c.l.b16 %v105
    %v382 = vunpack.c.h.b16 %v105
    %v383 = vunpack.c.l.b16 %v106
    %v384 = vunpack.c.h.b16 %v106
    %v385 = vunpack.c.l.b16 %v107
    %v386 = vunpack.c.h.b16 %v107
    %v387 = vunpack.c.l.b16 %v108
    %v388 = vunpack.c.h.b16 %v108
    %v389 = vunpack.c.l.b16 %v109
    %v390 = vunpack.c.h.b16 %v109
    %v391 = vunpack.c.l.b16 %v110
    %v392 = vunpack.c.h.b16 %v110
    %v393 = vunpack.c.l.b16 %v111
    %v394 = vunpack.c.h.b16 %v111
    %v395 = vunpack.c.l.b16 %v112
    %v396 = vunpack.c.h.b16 %v112
    %v397 = vunpack.c.l.b16 %v113
    %v398 = vunpack.c.h.b16 %v113
    %v399 = vunpack.c.l.b16 %v114
    %v400 = vunpack.c.h.b16 %v114
    %v401 = vunpack.c.l.b16 %v115
    %v402 = vunpack.c.h.b16 %v115
    %v403 = vunpack.c.l.b16 %v116
    %v404 = vunpack.c.h.b16 %v116
    %v405 = vunpack.c.l.b16 %v117
    %v406 = vunpack.c.h.b16 %v117
    %v407 = vunpack.c.l.b16 %v118
    %v408 = vunpack.c.h.b16 %v118
    %v409 = vunpack.c.l.b16 %v119
    %v410 = vunpack.c.h.b16 %v119
    %v411 = vunpack.c.l.b16 %v120
    %v412 = vunpack.c.h.b16 %v120
    %v413 = vunpack.c.l.b16 %v121
    %v414 = vunpack.c.h.b16 %v121
    %v415 = vunpack.c.l.b16 %v122
    %v416 = vunpack.c.h.b16 %v122
    %v417 = vunpack.c.l.b16 %v123
    %v418 = vunpack.c.h.b16 %v123
    %v419 = vunpack.c.l.b16 %v124
    %v420 = vunpack.c.h.b16 %v124
    %v421 = vunpack.c.l.b16 %v125
    %v422 = vunpack.c.h.b16 %v125
    %v423 = vunpack.c.l.b16 %v126
    %v424 = vunpack.c.h.b16 %v126
    %v425 = vunpack.c.l.b16 %v127
    %v426 = vunpack.c.h.b16 %v127
    %v427 = vunpack.c.l.b16 %v128
    %v428 = vunpack.c.h.b16 %v128
    %v429 = vunpack.c.l.b16 %v129
    %v430 = vunpack.c.h.b16 %v129
    %v431 = vunpack.c.l.b16 %v130
    %v432 = vunpack.c.h.b16 %v130
    %v433 = vunpack.c.l.b16 %v131
    %v434 = vunpack.c.h.b16 %v131
    %v435 = vunpack.c.l.b16 %v132
    %v436 = vunpack.c.h.b16 %v132
    %v437 = vunpack.c.l.b16 %v133
    %v438 = vunpack.c.h.b16 %v133
    %v439 = vunpack.c.l.b16 %v134
    %v440 = vunpack.c.h.b16 %v134
    %v441 = vunpack.c.l.b16 %v135
    %v442 = vunpack.c.h.b16 %v135
    %v443 = vunpack.c.l.b16 %v136
    %v444 = vunpack.c.h.b16 %v136
    %v445 = vunpack.c.l.b16 %v137
    %v446 = vunpack.c.h.b16 %v137
    %v447 = vunpack.c.l.b16 %v138
    %v448 = vunpack.c.h.b16 %v138
    %v449 = vunpack.c.l.b16 %v139
    %v450 = vunpack.c.h.b16 %v139
    %v451 = vunpack.c.l.b16 %v140
    %v452 = vunpack.c.h.b16 %v140
    %v453 = vunpack.c.l.b16 %v141
    %v454 = vunpack.c.h.b16 %v141
    %v455 = vunpack.c.l.b16 %v142
    %v456 = vunpack.c.h.b16 %v142
    %v457 = vunpack.c.l.b16 %v143
    %v458 = vunpack.c.h.b16 %v143
    %v459 = vunpack.c.l.b16 %v144
    %v460 = vunpack.c.h.b16 %v144
    %v461 = vunpack.c.l.b16 %v145
    %v462 = vunpack.c.h.b16 %v145
    %v463 = vunpack.c.l.b16 %v146
    %v464 = vunpack.c.h.b16 %v146
    %v465 = vunpack.c.l.b16 %v147
    %v466 = vunpack.c.h.b16 %v147
    %v467 = vunpack.c.l.b16 %v148
    %v468 = vunpack.c.h.b16 %v148
    %v469 = vunpack.c.l.b16 %v149
    %v470 = vunpack.c.h.b16 %v149
    %v471 = vunpack.c.l.b16 %v150
    %v472 = vunpack.c.h.b16 %v150
    %v473 = vunpack.c.l.b16 %v151
    %v474 = vunpack.c.h.b16 %v151
    %v475 = vunpack.c.l.b16 %v152
    %v476 = vunpack.c.h.b16 %v152
    %v477 = vunpack.c.l.b16 %v153
    %v478 = vunpack.c.h.b16 %v153
    %v479 = vunpack.c.l.b16 %v154
    %v480 = vunpack.c.h.b16 %v154
    %v481 = vunpack.c.l.b16 %v155
    %v482 = vunpack.c.h.b16 %v155
    %v483 = vunpack.c.l.b16 %v156
    %v484 = vunpack.c.h.b16 %v156
    %v485 = vunpack.c.l.b16 %v157
    %v486 = vunpack.c.h.b16 %v157
    %v487 = vunpack.c.l.b16 %v158
    %v488 = vunpack.c.h.b16 %v158
    %v489 = vunpack.c.l.b16 %v159
    %v490 = vunpack.c.h.b16 %v159
    %v491 = vunpack.c.l.b16 %v160
    %v492 = vunpack.c.h.b16 %v160
    %v493 = vunpack.c.l.b16 %v161
    %v494 = vunpack.c.h.b16 %v161
    %v495 = vunpack.c.l.b16 %v162
    %v496 = vunpack.c.h.b16 %v162
    %v497 = vunpack.c.l.b16 %v163
    %v498 = vunpack.c.h.b16 %v163
    %v499 = vunpack.c.l.b16 %v164
    %v500 = vunpack.c.h.b16 %v164
    %v501 = vunpack.c.l.b16 %v165
    %v502 = vunpack.c.h.b16 %v165
    %v503 = vunpack.c.l.b16 %v166
    %v504 = vunpack.c.h.b16 %v166
    %v505 = vunpack.c.l.b16 %v167
    %v506 = vunpack.c.h.b16 %v167
    %v507 = vunpack.c.l.b16 %v168
    %v508 = vunpack.c.h.b16 %v168
    %v509 = vunpack.c.l.b16 %v169
    %v510 = vunpack.c.h.b16 %v169
    %v511 = vunpack.c.l.b16 %v170
    %v512 = vunpack.c.h.b16 %v170
    %v513 = vunpack.c.l.b16 %v171
    %v514 = vunpack.c.h.b16 %v171
    %v515 = vunpack.c.l.b16 %v172
    %v516 = vunpack.c.h.b16 %v172
    %v517 = vunpack.c.l.b16 %v173
    %v518 = vunpack.c.h.b16 %v173
    %v519 = vunpack.c.l.b16 %v174
    %v520 = vunpack.c.h.b16 %v174
    %v521 = vunpack.c.l.b16 %v175
    %v522 = vunpack.c.h.b16 %v175
    %v523 = vunpack.c.l.b16 %v176
    %v524 = vunpack.c.h.b16 %v176
    %v525 = vunpack.c.l.b16 %v177
    %v526 = vunpack.c.h.b16 %v177
    %v527 = vunpack.c.l.b16 %v178
    %v528 = vunpack.c.h.b16 %v178
    %v529 = vunpack.c.l.b16 %v179
    %v530 = vunpack.c.h.b16 %v179
    %v531 = vunpack.c.l.b16 %v180
    %v532 = vunpack.c.h.b16 %v180
    %v533 = vunpack.c.l.b16 %v181
    %v534 = vunpack.c.h.b16 %v181
    %v535 = vunpack.c.l.b16 %v182
    %v536 = vunpack.c.h.b16 %v182
    %v537 = vunpack.c.l.b16 %v183
    %v538 = vunpack.c.h.b16 %v183
    %v539 = vunpack.c.l.b16 %v184
    %v540 = vunpack.c.h.b16 %v184
    %v541 = vunpack.c.l.b16 %v185
    %v542 = vunpack.c.h.b16 %v185
    %v543 = vunpack.c.l.b16 %v186
    %v544 = vunpack.c.h.b16 %v186
    %v545 = vunpack.c.l.b16 %v187
    %v546 = vunpack.c.h.b16 %v187
    %v547 = vunpack.c.l.b16 %v188
    %v548 = vunpack.c.h.b16 %v188
    %v549 = vunpack.c.l.b16 %v189
    %v550 = vunpack.c.h.b16 %v189
    %v551 = vunpack.c.l.b16 %v190
    %v552 = vunpack.c.h.b16 %v190
    %v553 = vunpack.c.l.b16 %v191
    %v554 = vunpack.c.h.b16 %v191
    %v555 = vunpack.c.l.b16 %v192
    %v556 = vunpack.c.h.b16 %v192
    %v557 = vunpack.c.l.b16 %v193
    %v558 = vunpack.c.h.b16 %v193
    %v559 = vunpack.c.l.b16 %v194
    %v560 = vunpack.c.h.b16 %v194
    %v561 = vunpack.c.l.b16 %v195
    %v562 = vunpack.c.h.b16 %v195
    %v563 = vunpack.c.l.b16 %v196
    %v564 = vunpack.c.h.b16 %v196
    %v565 = vunpack.c.l.b16 %v197
    %v566 = vunpack.c.h.b16 %v197
    %v567 = vunpack.c.l.b16 %v198
    %v568 = vunpack.c.h.b16 %v198
    %v569 = vunpack.c.l.b16 %v199
    %v570 = vunpack.c.h.b16 %v199
    %v571 = vunpack.c.l.b16 %v200
    %v572 = vunpack.c.h.b16 %v200
    %v573 = vunpack.c.l.b16 %v201
    %v574 = vunpack.c.h.b16 %v201
    %v575 = vunpack.c.l.b16 %v202
    %v576 = vunpack.c.h.b16 %v202
    %v577 = vunpack.c.l.b16 %v203
    %v578 = vunpack.c.h.b16 %v203
    %v579 = vunpack.c.l.b16 %v204
    %v580 = vunpack.c.h.b16 %v204
    %v581 = vunpack.c.l.b16 %v205
    %v582 = vunpack.c.h.b16 %v205
    %v583 = vunpack.c.l.b16 %v206
    %v584 = vunpack.c.h.b16 %v206
    %v585 = vunpack.c.l.b16 %v207
    %v586 = vunpack.c.h.b16 %v207
    %v587 = vunpack.c.l.b16 %v208
    %v588 = vunpack.c.h.b16 %v208
    %v589 = vunpack.c.l.b16 %v209
    %v590 = vunpack.c.h.b16 %v209
    %v591 = vunpack.c.l.b16 %v210
    %v592 = vunpack.c.h.b16 %v210
    %v593 = vunpack.c.l.b16 %v211
    %v594 = vunpack.c.h.b16 %v211
    %v595 = vunpack.c.l.b16 %v212
    %v596 = vunpack.c.h.b16 %v212
    %v597 = vunpack.c.l.b16 %v213
    %v598 = vunpack.c.h.b16 %v213
    %v599 = vunpack.c.l.b16 %v214
    %v600 = vunpack.c.h.b16 %v214
    %v601 = vunpack.c.l.b16 %v215
    %v602 = vunpack.c.h.b16 %v215
    %v603 = vunpack.c.l.b16 %v216
    %v604 = vunpack.c.h.b16 %v216
    %v605 = vunpack.c.l.b16 %v217
    %v606 = vunpack.c.h.b16 %v217
    %v607 = vunpack.c.l.b16 %v218
    %v608 = vunpack.c.h.b16 %v218
    %v609 = vunpack.c.l.b16 %v219
    %v610 = vunpack.c.h.b16 %v219
    %v611 = vunpack.c.l.b16 %v220
    %v612 = vunpack.c.h.b16 %v220
    %v613 = vunpack.c.l.b16 %v221
    %v614 = vunpack.c.h.b16 %v221
    %v615 = vunpack.c.l.b16 %v222
    %v616 = vunpack.c.h.b16 %v222
    %v617 = vunpack.c.l.b16 %v223
    %v618 = vunpack.c.h.b16 %v223
    %v619 = vunpack.c.l.b16 %v224
    %v620 = vunpack.c.h.b16 %v224
    %v621 = vpack.c.b16 %v367, %v365
    %v622 = vpack.c.b16 %v368, %v366
    %v623 = vpack.c.b16 %v371, %v369
    %v624 = vpack.c.b16 %v372, %v370
    %v625 = vpack.c.b16 %v375, %v373
    %v626 = vpack.c.b16 %v376, %v374
    %v627 = vpack.c.b16 %v379, %v377
    %v628 = vpack.c.b16 %v380, %v378
    %v629 = vpack.c.b16 %v383, %v381
    %v630 = vpack.c.b16 %v384, %v382
    %v631 = vpack.c.b16 %v387, %v385
    %v632 = vpack.c.b16 %v388, %v386
    %v633 = vpack.c.b16 %v391, %v389
    %v634 = vpack.c.b16 %v392, %v390
    %v635 = vpack.c.b16 %v395, %v393
    %v636 = vpack.c.b16 %v396, %v394
    %v637 = vpack.c.b16 %v399, %v397
    %v638 = vpack.c.b16 %v400, %v398
    %v639 = vpack.c.b16 %v403, %v401
    %v640 = vpack.c.b16 %v404, %v402
    %v641 = vpack.c.b16 %v407, %v405
    %v642 = vpack.c.b16 %v408, %v406
    %v643 = vpack.c.b16 %v411, %v409
    %v644 = vpack.c.b16 %v412, %v410
    %v645 = vpack.c.b16 %v415, %v413
    %v646 = vpack.c.b16 %v416, %v414
    %v647 = vpack.c.b16 %v419, %v417
    %v648 = vpack.c.b16 %v420, %v418
    %v649 = vpack.c.b16 %v423, %v421
    %v650 = vpack.c.b16 %v424, %v422
    %v651 = vpack.c.b16 %v427, %v425
    %v652 = vpack.c.b16 %v428, %v426
    %v653 = vpack.c.b16 %v431, %v429
    %v654 = vpack.c.b16 %v432, %v430
    %v655 = vpack.c.b16 %v435, %v433
    %v656 = vpack.c.b16 %v436, %v434
    %v657 = vpack.c.b16 %v439, %v437
    %v658 = vpack.c.b16 %v440, %v438
    %v659 = vpack.c.b16 %v443, %v441
    %v660 = vpack.c.b16 %v444, %v442
    %v661 = vpack.c.b16 %v447, %v445
    %v662 = vpack.c.b16 %v448, %v446
    %v663 = vpack.c.b16 %v451, %v449
    %v664 = vpack.c.b16 %v452, %v450
    %v665 = vpack.c.b16 %v455, %v453
    %v666 = vpack.c.b16 %v456, %v454
    %v667 = vpack.c.b16 %v459, %v457
    %v668 = vpack.c.b16 %v460, %v458
    %v669 = vpack.c.b16 %v463, %v461
    %v670 = vpack.c.b16 %v464, %v462
    %v671 = vpack.c.b16 %v467, %v465
    %v672 = vpack.c.b16 %v468, %v466
    %v673 = vpack.c.b16 %v471, %v469
    %v674 = vpack.c.b16 %v472, %v470
    %v675 = vpack.c.b16 %v475, %v473
    %v676 = vpack.c.b16 %v476, %v474
    %v677 = vpack.c.b16 %v479, %v477
    %v678 = vpack.c.b16 %v480, %v478
    %v679 = vpack.c.b16 %v483, %v481
    %v680 = vpack.c.b16 %v484, %v482
    %v681 = vpack.c.b16 %v487, %v485
    %v682 = vpack.c.b16 %v488, %v486
    %v683 = vpack.c.b16 %v491, %v489
    %v684 = vpack.c.b16 %v492, %v490
    %v685 = vpack.c.b16 %v495, %v493
    %v686 = vpack.c.b16 %v496, %v494
    %v687 = vpack.c.b16 %v499, %v497
    %v688 = vpack.c.b16 %v500, %v498
    %v689 = vpack.c.b16 %v503, %v501
    %v690 = vpack.c.b16 %v504, %v502
    %v691 = vpack.c.b16 %v507, %v505
    %v692 = vpack.c.b16 %v508, %v506
    %v693 = vpack.c.b16 %v511, %v509
    %v694 = vpack.c.b16 %v512, %v510
    %v695 = vpack.c.b16 %v515, %v513
    %v696 = vpack.c.b16 %v516, %v514
    %v697 = vpack.c.b16 %v519, %v517
    %v698 = vpack.c.b16 %v520, %v518
    %v699 = vpack.c.b16 %v523, %v521
    %v700 = vpack.c.b16 %v524, %v522
    %v701 = vpack.c.b16 %v527, %v525
    %v702 = vpack.c.b16 %v528, %v526
    %v703 = vpack.c.b16 %v531, %v529
    %v704 = vpack.c.b16 %v532, %v530
    %v705 = vpack.c.b16 %v535, %v533
    %v706 = vpack.c.b16 %v536, %v534
    %v707 = vpack.c.b16 %v539, %v537
    %v708 = vpack.c.b16 %v540, %v538
    %v709 = vpack.c.b16 %v543, %v541
    %v710 = vpack.c.b16 %v544, %v542
    %v711 = vpack.c.b16 %v547, %v545
    %v712 = vpack.c.b16 %v548, %v546
    %v713 = vpack.c.b16 %v551, %v549
    %v714 = vpack.c.b16 %v552, %v550
    %v715 = vpack.c.b16 %v555, %v553
    %v716 = vpack.c.b16 %v556, %v554
    %v717 = vpack.c.b16 %v559, %v557
    %v718 = vpack.c.b16 %v560, %v558
    %v719 = vpack.c.b16 %v563, %v561
    %v720 = vpack.c.b16 %v564, %v562
    %v721 = vpack.c.b16 %v567, %v565
    %v722 = vpack.c.b16 %v568, %v566
    %v723 = vpack.c.b16 %v571, %v569
    %v724 = vpack.c.b16 %v572, %v570
    %v725 = vpack.c.b16 %v575, %v573
    %v726 = vpack.c.b16 %v576, %v574
    %v727 = vpack.c.b16 %v579, %v577
    %v728 = vpack.c.b16 %v580, %v578
    %v729 = vpack.c.b16 %v583, %v581
    %v730 = vpack.c.b16 %v584, %v582
    %v731 = vpack.c.b16 %v587, %v585
    %v732 = vpack.c.b16 %v588, %v586
    %v733 = vpack.c.b16 %v591, %v589
    %v734 = vpack.c.b16 %v592, %v590
    %v735 = vpack.c.b16 %v595, %v593
    %v736 = vpack.c.b16 %v596, %v594
    %v737 = vpack.c.b16 %v599, %v597
    %v738 = vpack.c.b16 %v600, %v598
    %v739 = vpack.c.b16 %v603, %v601
    %v740 = vpack.c.b16 %v604, %v602
    %v741 = vpack.c.b16 %v607, %v605
    %v742 = vpack.c.b16 %v608, %v606
    %v743 = vpack.c.b16 %v611, %v609
    %v744 = vpack.c.b16 %v612, %v610
    %v745 = vpack.c.b16 %v615, %v613
    %v746 = vpack.c.b16 %v616, %v614
    %v747 = vpack.c.b16 %v619, %v617
    %v748 = vpack.c.b16 %v620, %v618
    %877 = vmatprep.subr.bf16.mxu0 %v622
    %878 = vmatpush1.bf16.msra.mxu0 %v621
    %879 = vmatprep.subr.bf16.mxu0 %v624
    %880 = vmatpush1.bf16.msra.mxu0 %v623
    %881 = vmatprep.subr.bf16.mxu0 %v626
    %882 = vmatpush1.bf16.msra.mxu0 %v625
    %883 = vmatprep.subr.bf16.mxu0 %v628
    %884 = vmatpush1.bf16.msra.mxu0 %v627
    %885 = vmatprep.subr.bf16.mxu0 %v630
    %886 = vmatpush1.bf16.msra.mxu0 %v629
    %887 = vmatprep.subr.bf16.mxu0 %v632
    %888 = vmatpush1.bf16.msra.mxu0 %v631
    %889 = vmatprep.subr.bf16.mxu0 %v634
    %890 = vmatpush1.bf16.msra.mxu0 %v633
    %891 = vmatprep.subr.bf16.mxu0 %v636
    %892 = vmatpush1.bf16.msra.mxu0 %v635
    %893 = vmatprep.subr.bf16.mxu0 %v638
    %894 = vmatpush1.bf16.msra.mxu0 %v637
    %895 = vmatprep.subr.bf16.mxu0 %v640
    %896 = vmatpush1.bf16.msra.mxu0 %v639
    %897 = vmatprep.subr.bf16.mxu0 %v642
    %898 = vmatpush1.bf16.msra.mxu0 %v641
    %899 = vmatprep.subr.bf16.mxu0 %v644
    %900 = vmatpush1.bf16.msra.mxu0 %v643
    %901 = vmatprep.subr.bf16.mxu0 %v646
    %902 = vmatpush1.bf16.msra.mxu0 %v645
    %903 = vmatprep.subr.bf16.mxu0 %v648
    %904 = vmatpush1.bf16.msra.mxu0 %v647
    %905 = vmatprep.subr.bf16.mxu0 %v650
    %906 = vmatpush1.bf16.msra.mxu0 %v649
    %907 = vmatprep.subr.bf16.mxu0 %v652
    %908 = vmatpush1.bf16.msra.mxu0 %v651
    %909 = vmatprep.mubr.bf16.mxu0 %v90
    %910 = vmatmul.mubr.bf16.gmra.mrb[0].mxu0 %v89
    %v911 = vpop.f32.mrb[0].mxu0
    %v912 = vadd.f32 %v230, %v911
    %v913 = vpop.f32.mrb[0].mxu0
    %v914 = vadd.f32 %v234, %v913
    %v915 = vpop.f32.mrb[0].mxu0
    %v916 = vpop.f32.mrb[0].mxu0
    %917 = vdwg.mxu0
    %918 = vmatprep.subr.bf16.mxu0 %v654
    %919 = vmatpush1.bf16.msra.mxu0 %v653
    %920 = vmatprep.subr.bf16.mxu0 %v656
    %921 = vmatpush1.bf16.msra.mxu0 %v655
    %922 = vmatprep.subr.bf16.mxu0 %v658
    %923 = vmatpush1.bf16.msra.mxu0 %v657
    %924 = vmatprep.subr.bf16.mxu0 %v660
    %925 = vmatpush1.bf16.msra.mxu0 %v659
    %926 = vmatprep.subr.bf16.mxu0 %v662
    %927 = vmatpush1.bf16.msra.mxu0 %v661
    %928 = vmatprep.subr.bf16.mxu0 %v664
    %929 = vmatpush1.bf16.msra.mxu0 %v663
    %930 = vmatprep.subr.bf16.mxu0 %v666
    %931 = vmatpush1.bf16.msra.mxu0 %v665
    %932 = vmatprep.subr.bf16.mxu0 %v668
    %933 = vmatpush1.bf16.msra.mxu0 %v667
    %934 = vmatprep.subr.bf16.mxu0 %v670
    %935 = vmatpush1.bf16.msra.mxu0 %v669
    %936 = vmatprep.subr.bf16.mxu0 %v672
    %937 = vmatpush1.bf16.msra.mxu0 %v671
    %938 = vmatprep.subr.bf16.mxu0 %v674
    %939 = vmatpush1.bf16.msra.mxu0 %v673
    %940 = vmatprep.subr.bf16.mxu0 %v676
    %941 = vmatpush1.bf16.msra.mxu0 %v675
    %942 = vmatprep.subr.bf16.mxu0 %v678
    %943 = vmatpush1.bf16.msra.mxu0 %v677
    %944 = vmatprep.subr.bf16.mxu0 %v680
    %945 = vmatpush1.bf16.msra.mxu0 %v679
    %946 = vmatprep.subr.bf16.mxu0 %v682
    %947 = vmatpush1.bf16.msra.mxu0 %v681
    %948 = vmatprep.subr.bf16.mxu0 %v684
    %949 = vmatpush1.bf16.msra.mxu0 %v683
    %950 = vmatprep.mubr.bf16.mxu0 %v92
    %951 = vmatmul.mubr.bf16.gmra.mrb[0].mxu0 %v91
    %v952 = vpop.f32.mrb[0].mxu0
    %v953 = vadd.f32 %v912, %v952
    %v954 = vpop.f32.mrb[0].mxu0
    %v955 = vadd.f32 %v914, %v954
    %v956 = vpop.f32.mrb[0].mxu0
    %v957 = vpop.f32.mrb[0].mxu0
    %958 = vdwg.mxu0
    %959 = vmatprep.subr.bf16.mxu0 %v686
    %960 = vmatpush1.bf16.msra.mxu0 %v685
    %961 = vmatprep.subr.bf16.mxu0 %v688
    %962 = vmatpush1.bf16.msra.mxu0 %v687
    %963 = vmatprep.subr.bf16.mxu0 %v690
    %964 = vmatpush1.bf16.msra.mxu0 %v689
    %965 = vmatprep.subr.bf16.mxu0 %v692
    %966 = vmatpush1.bf16.msra.mxu0 %v691
    %967 = vmatprep.subr.bf16.mxu0 %v694
    %968 = vmatpush1.bf16.msra.mxu0 %v693
    %969 = vmatprep.subr.bf16.mxu0 %v696
    %970 = vmatpush1.bf16.msra.mxu0 %v695
    %971 = vmatprep.subr.bf16.mxu0 %v698
    %972 = vmatpush1.bf16.msra.mxu0 %v697
    %973 = vmatprep.subr.bf16.mxu0 %v700
    %974 = vmatpush1.bf16.msra.mxu0 %v699
    %975 = vmatprep.subr.bf16.mxu0 %v702
    %976 = vmatpush1.bf16.msra.mxu0 %v701
    %977 = vmatprep.subr.bf16.mxu0 %v704
    %978 = vmatpush1.bf16.msra.mxu0 %v703
    %979 = vmatprep.subr.bf16.mxu0 %v706
    %980 = vmatpush1.bf16.msra.mxu0 %v705
    %981 = vmatprep.subr.bf16.mxu0 %v708
    %982 = vmatpush1.bf16.msra.mxu0 %v707
    %983 = vmatprep.subr.bf16.mxu0 %v710
    %984 = vmatpush1.bf16.msra.mxu0 %v709
    %985 = vmatprep.subr.bf16.mxu0 %v712
    %986 = vmatpush1.bf16.msra.mxu0 %v711
    %987 = vmatprep.subr.bf16.mxu0 %v714
    %988 = vmatpush1.bf16.msra.mxu0 %v713
    %989 = vmatprep.subr.bf16.mxu0 %v716
    %990 = vmatpush1.bf16.msra.mxu0 %v715
    %991 = vmatprep.mubr.bf16.mxu0 %v94
    %992 = vmatmul.mubr.bf16.gmra.mrb[0].mxu0 %v93
    %v993 = vpop.f32.mrb[0].mxu0
    %v994 = vadd.f32 %v953, %v993
    %v995 = vpop.f32.mrb[0].mxu0
    %v996 = vadd.f32 %v955, %v995
    %v997 = vpop.f32.mrb[0].mxu0
    %v998 = vpop.f32.mrb[0].mxu0
    %999 = vdwg.mxu0
    %1000 = vmatprep.subr.bf16.mxu0 %v718
    %1001 = vmatpush1.bf16.msra.mxu0 %v717
    %1002 = vmatprep.subr.bf16.mxu0 %v720
    %1003 = vmatpush1.bf16.msra.mxu0 %v719
    %1004 = vmatprep.subr.bf16.mxu0 %v722
    %1005 = vmatpush1.bf16.msra.mxu0 %v721
    %1006 = vmatprep.subr.bf16.mxu0 %v724
    %1007 = vmatpush1.bf16.msra.mxu0 %v723
    %1008 = vmatprep.subr.bf16.mxu0 %v726
    %1009 = vmatpush1.bf16.msra.mxu0 %v725
    %1010 = vmatprep.subr.bf16.mxu0 %v728
    %1011 = vmatpush1.bf16.msra.mxu0 %v727
    %1012 = vmatprep.subr.bf16.mxu0 %v730
    %1013 = vmatpush1.bf16.msra.mxu0 %v729
    %1014 = vmatprep.subr.bf16.mxu0 %v732
    %1015 = vmatpush1.bf16.msra.mxu0 %v731
    %1016 = vmatprep.subr.bf16.mxu0 %v734
    %1017 = vmatpush1.bf16.msra.mxu0 %v733
    %1018 = vmatprep.subr.bf16.mxu0 %v736
    %1019 = vmatpush1.bf16.msra.mxu0 %v735
    %1020 = vmatprep.subr.bf16.mxu0 %v738
    %1021 = vmatpush1.bf16.msra.mxu0 %v737
    %1022 = vmatprep.subr.bf16.mxu0 %v740
    %1023 = vmatpush1.bf16.msra.mxu0 %v739
    %1024 = vmatprep.subr.bf16.mxu0 %v742
    %1025 = vmatpush1.bf16.msra.mxu0 %v741
    %1026 = vmatprep.subr.bf16.mxu0 %v744
    %1027 = vmatpush1.bf16.msra.mxu0 %v743
    %1028 = vmatprep.subr.bf16.mxu0 %v746
    %1029 = vmatpush1.bf16.msra.mxu0 %v745
    %1030 = vmatprep.subr.bf16.mxu0 %v748
    %1031 = vmatpush1.bf16.msra.mxu0 %v747
    %1032 = vmatprep.mubr.bf16.mxu0 %v96
    %1033 = vmatmul.mubr.bf16.gmra.mrb[0].mxu0 %v95
    %v1034 = vpop.f32.mrb[0].mxu0
    %v1035 = vadd.f32 %v994, %v1034
    %v1036 = vpop.f32.mrb[0].mxu0
    %v1037 = vadd.f32 %v996, %v1036
    %v1038 = vpop.f32.mrb[0].mxu0
    %v1039 = vpop.f32.mrb[0].mxu0
    %1040 = vdwg.mxu0
    %v1041 = vmax.f32 %v1035, 0.0
    %v1042 = vmax.f32 %v1037, 0.0
    %v1043 = vpack.c.bf16 %v1041, %v1041
    %v1044 = vpack.c.bf16 %v1042, %v1042
    %v1045 = vld [vmem:[#allocation7] sm:$0xff]
    %v1046 = vld [vmem:[#allocation7 + $0x8] sm:$0xff]
    %v1047 = vld [vmem:[#allocation7 + $0x10] sm:$0xff]
    %v1048 = vld [vmem:[#allocation7 + $0x18] sm:$0xff]
    %v1049 = vld [vmem:[#allocation7 + $0x20] sm:$0xff]
    %v1050 = vld [vmem:[#allocation7 + $0x28] sm:$0xff]
    %v1051 = vld [vmem:[#allocation7 + $0x30] sm:$0xff]
    %v1052 = vld [vmem:[#allocation7 + $0x38] sm:$0xff]
    %v1053 = vld [vmem:[#allocation7 + $0x40] sm:$0xff]
    %v1054 = vld [vmem:[#allocation7 + $0x48] sm:$0xff]
    %v1055 = vld [vmem:[#allocation7 + $0x50] sm:$0xff]
    %v1056 = vld [vmem:[#allocation7 + $0x58] sm:$0xff]
    %v1057 = vld [vmem:[#allocation7 + $0x60] sm:$0xff]
    %v1058 = vld [vmem:[#allocation7 + $0x68] sm:$0xff]
    %v1059 = vld [vmem:[#allocation7 + $0x70] sm:$0xff]
    %v1060 = vld [vmem:[#allocation7 + $0x78] sm:$0xff]
    %v1061 = vld [vmem:[#allocation7 + $0x80] sm:$0xff]
    %v1062 = vld [vmem:[#allocation7 + $0x88] sm:$0xff]
    %v1063 = vld [vmem:[#allocation7 + $0x90] sm:$0xff]
    %v1064 = vld [vmem:[#allocation7 + $0x98] sm:$0xff]
    %v1065 = vld [vmem:[#allocation7 + $0xa0] sm:$0xff]
    %v1066 = vld [vmem:[#allocation7 + $0xa8] sm:$0xff]
    %v1067 = vld [vmem:[#allocation7 + $0xb0] sm:$0xff]
    %v1068 = vld [vmem:[#allocation7 + $0xb8] sm:$0xff]
    %v1069 = vld [vmem:[#allocation7 + $0xc0] sm:$0xff]
    %v1070 = vld [vmem:[#allocation7 + $0xc8] sm:$0xff]
    %v1071 = vld [vmem:[#allocation7 + $0xd0] sm:$0xff]
    %v1072 = vld [vmem:[#allocation7 + $0xd8] sm:$0xff]
    %v1073 = vld [vmem:[#allocation7 + $0xe0] sm:$0xff]
    %v1074 = vld [vmem:[#allocation7 + $0xe8] sm:$0xff]
    %v1075 = vld [vmem:[#allocation7 + $0xf0] sm:$0xff]
    %v1076 = vld [vmem:[#allocation7 + $0xf8] sm:$0xff]
    %v1077 = vld [vmem:[%s4] sm:$0x3]
    %v1079 = vlaneseq
    %v1080 = vshrl.u32 %v1079, 7
    %v1081 = vsub.s32 0, %v1080
    %v1082 = vrot.slane %v1077, %v1081
    %v1083 = vlaneseq
    %v1084 = vshrl.u32 %v1083, 7
    %v1085 = vsub.s32 1, %v1084
    %v1086 = vrot.slane %v1077, %v1085
    %v1121 = vunpack.c.l.b16 %v1045
    %v1122 = vunpack.c.h.b16 %v1045
    %v1123 = vunpack.c.l.b16 %v1046
    %v1124 = vunpack.c.h.b16 %v1046
    %v1125 = vunpack.c.l.b16 %v1047
    %v1126 = vunpack.c.h.b16 %v1047
    %v1127 = vunpack.c.l.b16 %v1048
    %v1128 = vunpack.c.h.b16 %v1048
    %v1129 = vunpack.c.l.b16 %v1049
    %v1130 = vunpack.c.h.b16 %v1049
    %v1131 = vunpack.c.l.b16 %v1050
    %v1132 = vunpack.c.h.b16 %v1050
    %v1133 = vunpack.c.l.b16 %v1051
    %v1134 = vunpack.c.h.b16 %v1051
    %v1135 = vunpack.c.l.b16 %v1052
    %v1136 = vunpack.c.h.b16 %v1052
    %v1137 = vunpack.c.l.b16 %v1053
    %v1138 = vunpack.c.h.b16 %v1053
    %v1139 = vunpack.c.l.b16 %v1054
    %v1140 = vunpack.c.h.b16 %v1054
    %v1141 = vunpack.c.l.b16 %v1055
    %v1142 = vunpack.c.h.b16 %v1055
    %v1143 = vunpack.c.l.b16 %v1056
    %v1144 = vunpack.c.h.b16 %v1056
    %v1145 = vunpack.c.l.b16 %v1057
    %v1146 = vunpack.c.h.b16 %v1057
    %v1147 = vunpack.c.l.b16 %v1058
    %v1148 = vunpack.c.h.b16 %v1058
    %v1149 = vunpack.c.l.b16 %v1059
    %v1150 = vunpack.c.h.b16 %v1059
    %v1151 = vunpack.c.l.b16 %v1060
    %v1152 = vunpack.c.h.b16 %v1060
    %v1153 = vunpack.c.l.b16 %v1061
    %v1154 = vunpack.c.h.b16 %v1061
    %v1155 = vunpack.c.l.b16 %v1062
    %v1156 = vunpack.c.h.b16 %v1062
    %v1157 = vunpack.c.l.b16 %v1063
    %v1158 = vunpack.c.h.b16 %v1063
    %v1159 = vunpack.c.l.b16 %v1064
    %v1160 = vunpack.c.h.b16 %v1064
    %v1161 = vunpack.c.l.b16 %v1065
    %v1162 = vunpack.c.h.b16 %v1065
    %v1163 = vunpack.c.l.b16 %v1066
    %v1164 = vunpack.c.h.b16 %v1066
    %v1165 = vunpack.c.l.b16 %v1067
    %v1166 = vunpack.c.h.b16 %v1067
    %v1167 = vunpack.c.l.b16 %v1068
    %v1168 = vunpack.c.h.b16 %v1068
    %v1169 = vunpack.c.l.b16 %v1069
    %v1170 = vunpack.c.h.b16 %v1069
    %v1171 = vunpack.c.l.b16 %v1070
    %v1172 = vunpack.c.h.b16 %v1070
    %v1173 = vunpack.c.l.b16 %v1071
    %v1174 = vunpack.c.h.b16 %v1071
    %v1175 = vunpack.c.l.b16 %v1072
    %v1176 = vunpack.c.h.b16 %v1072
    %v1177 = vunpack.c.l.b16 %v1073
    %v1178 = vunpack.c.h.b16 %v1073
    %v1179 = vunpack.c.l.b16 %v1074
    %v1180 = vunpack.c.h.b16 %v1074
    %v1181 = vunpack.c.l.b16 %v1075
    %v1182 = vunpack.c.h.b16 %v1075
    %v1183 = vunpack.c.l.b16 %v1076
    %v1184 = vunpack.c.h.b16 %v1076
    %v1185 = vpack.c.b16 %v1123, %v1121
    %v1186 = vpack.c.b16 %v1124, %v1122
    %v1187 = vpack.c.b16 %v1127, %v1125
    %v1188 = vpack.c.b16 %v1128, %v1126
    %v1189 = vpack.c.b16 %v1131, %v1129
    %v1190 = vpack.c.b16 %v1132, %v1130
    %v1191 = vpack.c.b16 %v1135, %v1133
    %v1192 = vpack.c.b16 %v1136, %v1134
    %v1193 = vpack.c.b16 %v1139, %v1137
    %v1194 = vpack.c.b16 %v1140, %v1138
    %v1195 = vpack.c.b16 %v1143, %v1141
    %v1196 = vpack.c.b16 %v1144, %v1142
    %v1197 = vpack.c.b16 %v1147, %v1145
    %v1198 = vpack.c.b16 %v1148, %v1146
    %v1199 = vpack.c.b16 %v1151, %v1149
    %v1200 = vpack.c.b16 %v1152, %v1150
    %v1201 = vpack.c.b16 %v1155, %v1153
    %v1202 = vpack.c.b16 %v1156, %v1154
    %v1203 = vpack.c.b16 %v1159, %v1157
    %v1204 = vpack.c.b16 %v1160, %v1158
    %v1205 = vpack.c.b16 %v1163, %v1161
    %v1206 = vpack.c.b16 %v1164, %v1162
    %v1207 = vpack.c.b16 %v1167, %v1165
    %v1208 = vpack.c.b16 %v1168, %v1166
    %v1209 = vpack.c.b16 %v1171, %v1169
    %v1210 = vpack.c.b16 %v1172, %v1170
    %v1211 = vpack.c.b16 %v1175, %v1173
    %v1212 = vpack.c.b16 %v1176, %v1174
    %v1213 = vpack.c.b16 %v1179, %v1177
    %v1214 = vpack.c.b16 %v1180, %v1178
    %v1215 = vpack.c.b16 %v1183, %v1181
    %v1216 = vpack.c.b16 %v1184, %v1182
    %1249 = vmatprep.subr.bf16.mxu0 %v1186
    %1250 = vmatpush1.bf16.msra.mxu0 %v1185
    %1251 = vmatprep.subr.bf16.mxu0 %v1188
    %1252 = vmatpush1.bf16.msra.mxu0 %v1187
    %1253 = vmatprep.subr.bf16.mxu0 %v1190
    %1254 = vmatpush1.bf16.msra.mxu0 %v1189
    %1255 = vmatprep.subr.bf16.mxu0 %v1192
    %1256 = vmatpush1.bf16.msra.mxu0 %v1191
    %1257 = vmatprep.subr.bf16.mxu0 %v1194
    %1258 = vmatpush1.bf16.msra.mxu0 %v1193
    %1259 = vmatprep.subr.bf16.mxu0 %v1196
    %1260 = vmatpush1.bf16.msra.mxu0 %v1195
    %1261 = vmatprep.subr.bf16.mxu0 %v1198
    %1262 = vmatpush1.bf16.msra.mxu0 %v1197
    %1263 = vmatprep.subr.bf16.mxu0 %v1200
    %1264 = vmatpush1.bf16.msra.mxu0 %v1199
    %1265 = vmatprep.subr.bf16.mxu0 %v1202
    %1266 = vmatpush1.bf16.msra.mxu0 %v1201
    %1267 = vmatprep.subr.bf16.mxu0 %v1204
    %1268 = vmatpush1.bf16.msra.mxu0 %v1203
    %1269 = vmatprep.subr.bf16.mxu0 %v1206
    %1270 = vmatpush1.bf16.msra.mxu0 %v1205
    %1271 = vmatprep.subr.bf16.mxu0 %v1208
    %1272 = vmatpush1.bf16.msra.mxu0 %v1207
    %1273 = vmatprep.subr.bf16.mxu0 %v1210
    %1274 = vmatpush1.bf16.msra.mxu0 %v1209
    %1275 = vmatprep.subr.bf16.mxu0 %v1212
    %1276 = vmatpush1.bf16.msra.mxu0 %v1211
    %1277 = vmatprep.subr.bf16.mxu0 %v1214
    %1278 = vmatpush1.bf16.msra.mxu0 %v1213
    %1279 = vmatprep.subr.bf16.mxu0 %v1216
    %1280 = vmatpush1.bf16.msra.mxu0 %v1215
    %1281 = vmatprep.mubr.bf16.mxu0 %v1044
    %1282 = vmatmul.mubr.bf16.gmra.mrb[0].mxu0 %v1043
    %v1283 = vpop.f32.mrb[0].mxu0
    %v1284 = vadd.f32 %v1082, %v1283
    %v1285 = vpop.f32.mrb[0].mxu0
    %v1286 = vadd.f32 %v1086, %v1285
    %v1287 = vpop.f32.mrb[0].mxu0
    %v1288 = vpop.f32.mrb[0].mxu0
    %1289 = vdwg.mxu0
    %v1290 = vmax.f32 %v1284, 0.0
    %v1291 = vmax.f32 %v1286, 0.0
    %v1292 = vpack.c.bf16 %v1290, %v1290
    %v1293 = vpack.c.bf16 %v1291, %v1291
    %v1294 = vld [vmem:[#allocation8] sm:$0xf]
    %v1295 = vld [vmem:[#allocation8 + $0x4] sm:$0xf]
    %v1296 = vld [vmem:[#allocation8 + $0x8] sm:$0xf]
    %v1297 = vld [vmem:[#allocation8 + $0xc] sm:$0xf]
    %v1298 = vld [vmem:[#allocation8 + $0x10] sm:$0xf]
    %v1299 = vld [vmem:[#allocation8 + $0x14] sm:$0xf]
    %v1300 = vld [vmem:[#allocation8 + $0x18] sm:$0xf]
    %v1301 = vld [vmem:[#allocation8 + $0x1c] sm:$0xf]
    %v1302 = vld [vmem:[#allocation8 + $0x20] sm:$0xf]
    %v1303 = vld [vmem:[#allocation8 + $0x24] sm:$0xf]
    %v1304 = vld [vmem:[#allocation8 + $0x28] sm:$0xf]
    %v1305 = vld [vmem:[#allocation8 + $0x2c] sm:$0xf]
    %v1306 = vld [vmem:[#allocation8 + $0x30] sm:$0xf]
    %v1307 = vld [vmem:[#allocation8 + $0x34] sm:$0xf]
    %v1308 = vld [vmem:[#allocation8 + $0x38] sm:$0xf]
    %v1309 = vld [vmem:[#allocation8 + $0x3c] sm:$0xf]
    %v1310 = vld [vmem:[#allocation8 + $0x40] sm:$0xf]
    %v1311 = vld [vmem:[#allocation8 + $0x44] sm:$0xf]
    %v1312 = vld [vmem:[#allocation8 + $0x48] sm:$0xf]
    %v1313 = vld [vmem:[#allocation8 + $0x4c] sm:$0xf]
    %v1314 = vld [vmem:[#allocation8 + $0x50] sm:$0xf]
    %v1315 = vld [vmem:[#allocation8 + $0x54] sm:$0xf]
    %v1316 = vld [vmem:[#allocation8 + $0x58] sm:$0xf]
    %v1317 = vld [vmem:[#allocation8 + $0x5c] sm:$0xf]
    %v1318 = vld [vmem:[#allocation8 + $0x60] sm:$0xf]
    %v1319 = vld [vmem:[#allocation8 + $0x64] sm:$0xf]
    %v1320 = vld [vmem:[#allocation8 + $0x68] sm:$0xf]
    %v1321 = vld [vmem:[#allocation8 + $0x6c] sm:$0xf]
    %v1322 = vld [vmem:[#allocation8 + $0x70] sm:$0xf]
    %v1323 = vld [vmem:[#allocation8 + $0x74] sm:$0xf]
    %v1324 = vld [vmem:[#allocation8 + $0x78] sm:$0xf]
    %v1325 = vld [vmem:[#allocation8 + $0x7c] sm:$0xf]
    %v1326 = vld [vmem:[%s6] sm:$0x1]
    %v1328 = vlaneseq
    %v1329 = vshrl.u32 %v1328, 7
    %v1330 = vsub.s32 0, %v1329
    %v1331 = vrot.slane %v1326, %v1330
    %v1365 = vunpack.c.l.b16 %v1294
    %v1366 = vunpack.c.l.b16 %v1295
    %v1367 = vunpack.c.l.b16 %v1296
    %v1368 = vunpack.c.l.b16 %v1297
    %v1369 = vunpack.c.l.b16 %v1298
    %v1370 = vunpack.c.l.b16 %v1299
    %v1371 = vunpack.c.l.b16 %v1300
    %v1372 = vunpack.c.l.b16 %v1301
    %v1373 = vunpack.c.l.b16 %v1302
    %v1374 = vunpack.c.l.b16 %v1303
    %v1375 = vunpack.c.l.b16 %v1304
    %v1376 = vunpack.c.l.b16 %v1305
    %v1377 = vunpack.c.l.b16 %v1306
    %v1378 = vunpack.c.l.b16 %v1307
    %v1379 = vunpack.c.l.b16 %v1308
    %v1380 = vunpack.c.l.b16 %v1309
    %v1381 = vunpack.c.l.b16 %v1310
    %v1382 = vunpack.c.l.b16 %v1311
    %v1383 = vunpack.c.l.b16 %v1312
    %v1384 = vunpack.c.l.b16 %v1313
    %v1385 = vunpack.c.l.b16 %v1314
    %v1386 = vunpack.c.l.b16 %v1315
    %v1387 = vunpack.c.l.b16 %v1316
    %v1388 = vunpack.c.l.b16 %v1317
    %v1389 = vunpack.c.l.b16 %v1318
    %v1390 = vunpack.c.l.b16 %v1319
    %v1391 = vunpack.c.l.b16 %v1320
    %v1392 = vunpack.c.l.b16 %v1321
    %v1393 = vunpack.c.l.b16 %v1322
    %v1394 = vunpack.c.l.b16 %v1323
    %v1395 = vunpack.c.l.b16 %v1324
    %v1396 = vunpack.c.l.b16 %v1325
    %v1397 = vpack.c.b16 %v1366, %v1365
    %v1398 = vpack.c.b16 %v1368, %v1367
    %v1399 = vpack.c.b16 %v1370, %v1369
    %v1400 = vpack.c.b16 %v1372, %v1371
    %v1401 = vpack.c.b16 %v1374, %v1373
    %v1402 = vpack.c.b16 %v1376, %v1375
    %v1403 = vpack.c.b16 %v1378, %v1377
    %v1404 = vpack.c.b16 %v1380, %v1379
    %v1405 = vpack.c.b16 %v1382, %v1381
    %v1406 = vpack.c.b16 %v1384, %v1383
    %v1407 = vpack.c.b16 %v1386, %v1385
    %v1408 = vpack.c.b16 %v1388, %v1387
    %v1409 = vpack.c.b16 %v1390, %v1389
    %v1410 = vpack.c.b16 %v1392, %v1391
    %v1411 = vpack.c.b16 %v1394, %v1393
    %v1412 = vpack.c.b16 %v1396, %v1395
    %1429 = vmatprep.subr.bf16.mxu0 0
    %1430 = vmatpush1.bf16.msra.mxu0 %v1397
    %1431 = vmatprep.subr.bf16.mxu0 0
    %1432 = vmatpush1.bf16.msra.mxu0 %v1398
    %1433 = vmatprep.subr.bf16.mxu0 0
    %1434 = vmatpush1.bf16.msra.mxu0 %v1399
    %1435 = vmatprep.subr.bf16.mxu0 0
    %1436 = vmatpush1.bf16.msra.mxu0 %v1400
    %1437 = vmatprep.subr.bf16.mxu0 0
    %1438 = vmatpush1.bf16.msra.mxu0 %v1401
    %1439 = vmatprep.subr.bf16.mxu0 0
    %1440 = vmatpush1.bf16.msra.mxu0 %v1402
    %1441 = vmatprep.subr.bf16.mxu0 0
    %1442 = vmatpush1.bf16.msra.mxu0 %v1403
    %1443 = vmatprep.subr.bf16.mxu0 0
    %1444 = vmatpush1.bf16.msra.mxu0 %v1404
    %1445 = vmatprep.subr.bf16.mxu0 0
    %1446 = vmatpush1.bf16.msra.mxu0 %v1405
    %1447 = vmatprep.subr.bf16.mxu0 0
    %1448 = vmatpush1.bf16.msra.mxu0 %v1406
    %1449 = vmatprep.subr.bf16.mxu0 0
    %1450 = vmatpush1.bf16.msra.mxu0 %v1407
    %1451 = vmatprep.subr.bf16.mxu0 0
    %1452 = vmatpush1.bf16.msra.mxu0 %v1408
    %1453 = vmatprep.subr.bf16.mxu0 0
    %1454 = vmatpush1.bf16.msra.mxu0 %v1409
    %1455 = vmatprep.subr.bf16.mxu0 0
    %1456 = vmatpush1.bf16.msra.mxu0 %v1410
    %1457 = vmatprep.subr.bf16.mxu0 0
    %1458 = vmatpush1.bf16.msra.mxu0 %v1411
    %1459 = vmatprep.subr.bf16.mxu0 0
    %1460 = vmatpush1.bf16.msra.mxu0 %v1412
    %1461 = vmatprep.mubr.bf16.mxu0 %v1293
    %1462 = vmatmul.mubr.bf16.gmra.mrb[0].mxu0 %v1292
    %v1463 = vpop.f32.mrb[0].mxu0
    %v1464 = vadd.f32 %v1331, %v1463
    %v1465 = vpop.f32.mrb[0].mxu0
    %v1466 = vpop.f32.mrb[0].mxu0
    %v1467 = vpop.f32.mrb[0].mxu0
    %1468 = vdwg.mxu0
    %1469 = vst [vmem:[#allocation10] sm:$0xff] %v1464
    // Predicated region
    $region46: #{tpu_custom_call.1} parent=1 // pred_check
      _
    $region47: #{tpu_custom_call.1} parent=1 // pred_check_branch
      %1471 = sbr.rel (0) target = $region49
    $region48: #{tpu_custom_call.1} parent=1 // pred_region
      %s1473 = ssub.s32 128, 128
      %1474 = vsyncadd [#allocation4], %s1473
      %s1476 = sshll.u32 [#allocation10], 4
      %s1477 = int_to_ptr.vmem [resolvable:$true] %s1476
      %1479 = dma.vmem_to_hbm [thread:$0]  %s1477, 128, %s7, [#allocation4]
    $region49: #{tpu_custom_call.1} parent=1 // pred_fallthru
      _
    // Predicated region
    $region50: #{tpu_custom_call.1} parent=1 // pred_check
      _
    $region51: #{tpu_custom_call.1} parent=1 // pred_check_branch
      %1481 = sbr.rel (0) target = $region53
    $region52: #{tpu_custom_call.1} parent=1 // pred_region
      %1482 = dma.done [#allocation4], 128
    $region53: #{tpu_custom_call.1} parent=1 // pred_fallthru
      _
    %1483 = vsyncpa [#allocation3], 1
    %1484 = vsyncpa [#allocation6], 1
    %1485 = vsyncpa [#allocation9], 1
    %1486 = vsyncpa [#allocation4], 1

// kernel: tpu_custom_call.1
$region0: #{tpu_custom_call.1}
  #allocation0 [shape = 'u32[]', space=smem, size = 0x4, offset = 0x4, fixed_abs, tag = 'smem constant byte address 0x4 - core index']
  #allocation1 [shape = 'u32[144,128]{1,0:T(1,128)}', space=vmem, size = 0x12000, scoped, tag = 'internal scratch']
  %s0 = inlined_call_operand.hbm [shape: f32[8,1024], index: 0, kind: input, shape index: {}]
  %s1 = inlined_call_operand.hbm [shape: bf16[1024,256], index: 1, kind: input, shape index: {}]
  %s2 = inlined_call_operand.vmem [shape: f32[1,256], index: 2, kind: input, shape index: {}]
  %s3 = inlined_call_operand.hbm [shape: bf16[256,256], index: 3, kind: input, shape index: {}]
  %s4 = inlined_call_operand.vmem [shape: f32[1,256], index: 4, kind: input, shape index: {}]
  %s5 = inlined_call_operand.hbm [shape: bf16[256,128], index: 5, kind: input, shape index: {}]
  %s6 = inlined_call_operand.vmem [shape: f32[1,128], index: 6, kind: input, shape index: {}]
  %s7 = inlined_call_operand.hbm [shape: f32[8,128], index: 7, kind: output, shape index: {}]
  %s8 = sld [smem:[#allocation0]]
  $region54: #{tpu_custom_call.1} parent=0
    _
  %s10 = ssub.s32 1, %s8
  %s11 = scalar_select 0, %s10, %s8
  $region1: #{tpu_custom_call.1} parent=0
    #allocation2 [shape = 'u8[32768]{0}', space=vmem, size = 0x8000, scoped, tag = 'input window, operand 0, single buffered']
    #allocation3 [shape = 's32[1]{0}', space=sflag, size = 0x4, scoped, tag = 'scoped memory for tpu_custom_call.1']
    #allocation4 [shape = 's32[1]{0}', space=sflag, size = 0x4, scoped, tag = 'scoped memory for tpu_custom_call.1']
    #allocation5 [shape = 'u8[524288]{0}', space=vmem, size = 0x80000, scoped, tag = 'input window, operand 1, single buffered']
    #allocation6 [shape = 's32[1]{0}', space=sflag, size = 0x4, scoped, tag = 'scoped memory for tpu_custom_call.1']
    #allocation7 [shape = 'u8[131072]{0}', space=vmem, size = 0x20000, scoped, tag = 'input window, operand 3, single buffered']
    #allocation8 [shape = 'u8[65536]{0}', space=vmem, size = 0x10000, scoped, tag = 'input window, operand 5, single buffered']
    #allocation9 [shape = 's32[1]{0}', space=sflag, size = 0x4, scoped, tag = 'scoped memory for tpu_custom_call.1']
    #allocation10 [shape = 'u8[4096]{0}', space=vmem, size = 0x1000, scoped, tag = 'output window, operand 0, single buffered']
    %12 = vsyncpa [#allocation3], 0
    %13 = vsyncpa [#allocation6], 0
    %14 = vsyncpa [#allocation9], 0
    %15 = vsyncpa [#allocation4], 0
    // Predicated region
    $region2: #{tpu_custom_call.1} parent=1 // pred_check
      _
    $region3: #{tpu_custom_call.1} parent=1 // pred_check_branch
      %17 = sbr.rel (0) target = $region5
    $region4: #{tpu_custom_call.1} parent=1 // pred_region
      %s19 = ssub.s32 1024, 1024
      %20 = vsyncadd [#allocation3], %s19
      %s22 = sshll.u32 [#allocation2], 4
      %s23 = int_to_ptr.vmem [resolvable:$true] %s22
      %25 = dma.hbm_to_vmem [thread:$0]  %s0, 1024, %s23, [#allocation3]
    $region5: #{tpu_custom_call.1} parent=1 // pred_fallthru
      _
    // Predicated region
    $region6: #{tpu_custom_call.1} parent=1 // pred_check
      _
    $region7: #{tpu_custom_call.1} parent=1 // pred_check_branch
      %27 = sbr.rel (0) target = $region9
    $region8: #{tpu_custom_call.1} parent=1 // pred_region
      %s29 = ssub.s32 16384, 16384
      %30 = vsyncadd [#allocation6], %s29
      %s31 = sshll.u32 [#allocation5], 4
      %s32 = int_to_ptr.vmem [resolvable:$true] %s31
      %37 = dma.hbm_to_vmem [thread:$0]  %s1, 16384, %s32, [#allocation6], 128, 128, 8
    $region9: #{tpu_custom_call.1} parent=1 // pred_fallthru
      _
    // Predicated region
    $region10: #{tpu_custom_call.1} parent=1 // pred_check
      _
    $region11: #{tpu_custom_call.1} parent=1 // pred_check_branch
      %39 = sbr.rel (0) target = $region13
    $region12: #{tpu_custom_call.1} parent=1 // pred_region
      _
    $region13: #{tpu_custom_call.1} parent=1 // pred_fallthru
      _
    // Predicated region
    $region14: #{tpu_custom_call.1} parent=1 // pred_check
      _
    $region15: #{tpu_custom_call.1} parent=1 // pred_check_branch
      %41 = sbr.rel (0) target = $region17
    $region16: #{tpu_custom_call.1} parent=1 // pred_region
      %s43 = ssub.s32 4096, 4096
      %44 = vsyncadd [#allocation6], %s43
      %s45 = sshll.u32 [#allocation7], 4
      %s46 = int_to_ptr.vmem [resolvable:$true] %s45
      %51 = dma.hbm_to_vmem [thread:$0]  %s3, 4096, %s46, [#allocation6], 128, 128, 8
    $region17: #{tpu_custom_call.1} parent=1 // pred_fallthru
      _
    // Predicated region
    $region18: #{tpu_custom_call.1} parent=1 // pred_check
      _
    $region19: #{tpu_custom_call.1} parent=1 // pred_check_branch
      %53 = sbr.rel (0) target = $region21
    $region20: #{tpu_custom_call.1} parent=1 // pred_region
      _
    $region21: #{tpu_custom_call.1} parent=1 // pred_fallthru
      _
    // Predicated region
    $region22: #{tpu_custom_call.1} parent=1 // pred_check
      _
    $region23: #{tpu_custom_call.1} parent=1 // pred_check_branch
      %55 = sbr.rel (0) target = $region25
    $region24: #{tpu_custom_call.1} parent=1 // pred_region
      %s57 = ssub.s32 2048, 2048
      %58 = vsyncadd [#allocation9], %s57
      %s59 = sshll.u32 [#allocation8], 4
      %s60 = int_to_ptr.vmem [resolvable:$true] %s59
      %65 = dma.hbm_to_vmem [thread:$0]  %s5, 2048, %s60, [#allocation9], 64, 64, 4
    $region25: #{tpu_custom_call.1} parent=1 // pred_fallthru
      _
    // Predicated region
    $region26: #{tpu_custom_call.1} parent=1 // pred_check
      _
    $region27: #{tpu_custom_call.1} parent=1 // pred_check_branch
      %67 = sbr.rel (0) target = $region29
    $region28: #{tpu_custom_call.1} parent=1 // pred_region
      _
    $region29: #{tpu_custom_call.1} parent=1 // pred_fallthru
      _
    // Predicated region
    $region30: #{tpu_custom_call.1} parent=1 // pred_check
      _
    $region31: #{tpu_custom_call.1} parent=1 // pred_check_branch
      %69 = sbr.rel (0) target = $region33
    $region32: #{tpu_custom_call.1} parent=1 // pred_region
      %70 = dma.done [#allocation3], 1024
    $region33: #{tpu_custom_call.1} parent=1 // pred_fallthru
      _
    // Predicated region
    $region34: #{tpu_custom_call.1} parent=1 // pred_check
      _
    $region35: #{tpu_custom_call.1} parent=1 // pred_check_branch
      %72 = sbr.rel (0) target = $region37
    $region36: #{tpu_custom_call.1} parent=1 // pred_region
      %73 = dma.done [#allocation6], 16384
    $region37: #{tpu_custom_call.1} parent=1 // pred_fallthru
      _
    // Predicated region
    $region38: #{tpu_custom_call.1} parent=1 // pred_check
      _
    $region39: #{tpu_custom_call.1} parent=1 // pred_check_branch
      %75 = sbr.rel (0) target = $region41
    $region40: #{tpu_custom_call.1} parent=1 // pred_region
      %76 = dma.done [#allocation6], 4096
    $region41: #{tpu_custom_call.1} parent=1 // pred_fallthru
      _
    // Predicated region
    $region42: #{tpu_custom_call.1} parent=1 // pred_check
      _
    $region43: #{tpu_custom_call.1} parent=1 // pred_check_branch
      %78 = sbr.rel (0) target = $region45
    $region44: #{tpu_custom_call.1} parent=1 // pred_region
      %79 = dma.done [#allocation9], 2048
    $region45: #{tpu_custom_call.1} parent=1 // pred_fallthru
      _
    %v81 = vld [vmem:[#allocation2] sm:$0xff]
    %v82 = vld [vmem:[#allocation2 + $0x8] sm:$0xff]
    %v83 = vld [vmem:[#allocation2 + $0x10] sm:$0xff]
    %v84 = vld [vmem:[#allocation2 + $0x18] sm:$0xff]
    %v85 = vld [vmem:[#allocation2 + $0x20] sm:$0xff]
    %v86 = vld [vmem:[#allocation2 + $0x28] sm:$0xff]
    %v87 = vld [vmem:[#allocation2 + $0x30] sm:$0xff]
    %v88 = vld [vmem:[#allocation2 + $0x38] sm:$0xff]
    %v89 = vpack.c.bf16 %v81, %v81
    %v90 = vpack.c.bf16 %v82, %v82
    %v91 = vpack.c.bf16 %v83, %v83
    %v92 = vpack.c.bf16 %v84, %v84
    %v93 = vpack.c.bf16 %v85, %v85
    %v94 = vpack.c.bf16 %v86, %v86
    %v95 = vpack.c.bf16 %v87, %v87
    %v96 = vpack.c.bf16 %v88, %v88
    %v97 = vld [vmem:[#allocation5] sm:$0xff]
    %v98 = vld [vmem:[#allocation5 + $0x8] sm:$0xff]
    %v99 = vld [vmem:[#allocation5 + $0x10] sm:$0xff]
    %v100 = vld [vmem:[#allocation5 + $0x18] sm:$0xff]
    %v101 = vld [vmem:[#allocation5 + $0x20] sm:$0xff]
    %v102 = vld [vmem:[#allocation5 + $0x28] sm:$0xff]
    %v103 = vld [vmem:[#allocation5 + $0x30] sm:$0xff]
    %v104 = vld [vmem:[#allocation5 + $0x38] sm:$0xff]
    %v105 = vld [vmem:[#allocation5 + $0x40] sm:$0xff]
    %v106 = vld [vmem:[#allocation5 + $0x48] sm:$0xff]
    %v107 = vld [vmem:[#allocation5 + $0x50] sm:$0xff]
    %v108 = vld [vmem:[#allocation5 + $0x58] sm:$0xff]
    %v109 = vld [vmem:[#allocation5 + $0x60] sm:$0xff]
    %v110 = vld [vmem:[#allocation5 + $0x68] sm:$0xff]
    %v111 = vld [vmem:[#allocation5 + $0x70] sm:$0xff]
    %v112 = vld [vmem:[#allocation5 + $0x78] sm:$0xff]
    %v113 = vld [vmem:[#allocation5 + $0x80] sm:$0xff]
    %v114 = vld [vmem:[#allocation5 + $0x88] sm:$0xff]
    %v115 = vld [vmem:[#allocation5 + $0x90] sm:$0xff]
    %v116 = vld [vmem:[#allocation5 + $0x98] sm:$0xff]
    %v117 = vld [vmem:[#allocation5 + $0xa0] sm:$0xff]
    %v118 = vld [vmem:[#allocation5 + $0xa8] sm:$0xff]
    %v119 = vld [vmem:[#allocation5 + $0xb0] sm:$0xff]
    %v120 = vld [vmem:[#allocation5 + $0xb8] sm:$0xff]
    %v121 = vld [vmem:[#allocation5 + $0xc0] sm:$0xff]
    %v122 = vld [vmem:[#allocation5 + $0xc8] sm:$0xff]
    %v123 = vld [vmem:[#allocation5 + $0xd0] sm:$0xff]
    %v124 = vld [vmem:[#allocation5 + $0xd8] sm:$0xff]
    %v125 = vld [vmem:[#allocation5 + $0xe0] sm:$0xff]
    %v126 = vld [vmem:[#allocation5 + $0xe8] sm:$0xff]
    %v127 = vld [vmem:[#allocation5 + $0xf0] sm:$0xff]
    %v128 = vld [vmem:[#allocation5 + $0xf8] sm:$0xff]
    %v129 = vld [vmem:[#allocation5 + $0x100] sm:$0xff]
    %v130 = vld [vmem:[#allocation5 + $0x108] sm:$0xff]
    %v131 = vld [vmem:[#allocation5 + $0x110] sm:$0xff]
    %v132 = vld [vmem:[#allocation5 + $0x118] sm:$0xff]
    %v133 = vld [vmem:[#allocation5 + $0x120] sm:$0xff]
    %v134 = vld [vmem:[#allocation5 + $0x128] sm:$0xff]
    %v135 = vld [vmem:[#allocation5 + $0x130] sm:$0xff]
    %v136 = vld [vmem:[#allocation5 + $0x138] sm:$0xff]
    %v137 = vld [vmem:[#allocation5 + $0x140] sm:$0xff]
    %v138 = vld [vmem:[#allocation5 + $0x148] sm:$0xff]
    %v139 = vld [vmem:[#allocation5 + $0x150] sm:$0xff]
    %v140 = vld [vmem:[#allocation5 + $0x158] sm:$0xff]
    %v141 = vld [vmem:[#allocation5 + $0x160] sm:$0xff]
    %v142 = vld [vmem:[#allocation5 + $0x168] sm:$0xff]
    %v143 = vld [vmem:[#allocation5 + $0x170] sm:$0xff]
    %v144 = vld [vmem:[#allocation5 + $0x178] sm:$0xff]
    %v145 = vld [vmem:[#allocation5 + $0x180] sm:$0xff]
    %v146 = vld [vmem:[#allocation5 + $0x188] sm:$0xff]
    %v147 = vld [vmem:[#allocation5 + $0x190] sm:$0xff]
    %v148 = vld [vmem:[#allocation5 + $0x198] sm:$0xff]
    %v149 = vld [vmem:[#allocation5 + $0x1a0] sm:$0xff]
    %v150 = vld [vmem:[#allocation5 + $0x1a8] sm:$0xff]
    %v151 = vld [vmem:[#allocation5 + $0x1b0] sm:$0xff]
    %v152 = vld [vmem:[#allocation5 + $0x1b8] sm:$0xff]
    %v153 = vld [vmem:[#allocation5 + $0x1c0] sm:$0xff]
    %v154 = vld [vmem:[#allocation5 + $0x1c8] sm:$0xff]
    %v155 = vld [vmem:[#allocation5 + $0x1d0] sm:$0xff]
    %v156 = vld [vmem:[#allocation5 + $0x1d8] sm:$0xff]
    %v157 = vld [vmem:[#allocation5 + $0x1e0] sm:$0xff]
    %v158 = vld [vmem:[#allocation5 + $0x1e8] sm:$0xff]
    %v159 = vld [vmem:[#allocation5 + $0x1f0] sm:$0xff]
    %v160 = vld [vmem:[#allocation5 + $0x1f8] sm:$0xff]
    %v161 = vld [vmem:[#allocation5 + $0x200] sm:$0xff]
    %v162 = vld [vmem:[#allocation5 + $0x208] sm:$0xff]
    %v163 = vld [vmem:[#allocation5 + $0x210] sm:$0xff]
    %v164 = vld [vmem:[#allocation5 + $0x218] sm:$0xff]
    %v165 = vld [vmem:[#allocation5 + $0x220] sm:$0xff]
    %v166 = vld [vmem:[#allocation5 + $0x228] sm:$0xff]
    %v167 = vld [vmem:[#allocation5 + $0x230] sm:$0xff]
    %v168 = vld [vmem:[#allocation5 + $0x238] sm:$0xff]
    %v169 = vld [vmem:[#allocation5 + $0x240] sm:$0xff]
    %v170 = vld [vmem:[#allocation5 + $0x248] sm:$0xff]
    %v171 = vld [vmem:[#allocation5 + $0x250] sm:$0xff]
    %v172 = vld [vmem:[#allocation5 + $0x258] sm:$0xff]
    %v173 = vld [vmem:[#allocation5 + $0x260] sm:$0xff]
    %v174 = vld [vmem:[#allocation5 + $0x268] sm:$0xff]
    %v175 = vld [vmem:[#allocation5 + $0x270] sm:$0xff]
    %v176 = vld [vmem:[#allocation5 + $0x278] sm:$0xff]
    %v177 = vld [vmem:[#allocation5 + $0x280] sm:$0xff]
    %v178 = vld [vmem:[#allocation5 + $0x288] sm:$0xff]
    %v179 = vld [vmem:[#allocation5 + $0x290] sm:$0xff]
    %v180 = vld [vmem:[#allocation5 + $0x298] sm:$0xff]
    %v181 = vld [vmem:[#allocation5 + $0x2a0] sm:$0xff]
    %v182 = vld [vmem:[#allocation5 + $0x2a8] sm:$0xff]
    %v183 = vld [vmem:[#allocation5 + $0x2b0] sm:$0xff]
    %v184 = vld [vmem:[#allocation5 + $0x2b8] sm:$0xff]
    %v185 = vld [vmem:[#allocation5 + $0x2c0] sm:$0xff]
    %v186 = vld [vmem:[#allocation5 + $0x2c8] sm:$0xff]
    %v187 = vld [vmem:[#allocation5 + $0x2d0] sm:$0xff]
    %v188 = vld [vmem:[#allocation5 + $0x2d8] sm:$0xff]
    %v189 = vld [vmem:[#allocation5 + $0x2e0] sm:$0xff]
    %v190 = vld [vmem:[#allocation5 + $0x2e8] sm:$0xff]
    %v191 = vld [vmem:[#allocation5 + $0x2f0] sm:$0xff]
    %v192 = vld [vmem:[#allocation5 + $0x2f8] sm:$0xff]
    %v193 = vld [vmem:[#allocation5 + $0x300] sm:$0xff]
    %v194 = vld [vmem:[#allocation5 + $0x308] sm:$0xff]
    %v195 = vld [vmem:[#allocation5 + $0x310] sm:$0xff]
    %v196 = vld [vmem:[#allocation5 + $0x318] sm:$0xff]
    %v197 = vld [vmem:[#allocation5 + $0x320] sm:$0xff]
    %v198 = vld [vmem:[#allocation5 + $0x328] sm:$0xff]
    %v199 = vld [vmem:[#allocation5 + $0x330] sm:$0xff]
    %v200 = vld [vmem:[#allocation5 + $0x338] sm:$0xff]
    %v201 = vld [vmem:[#allocation5 + $0x340] sm:$0xff]
    %v202 = vld [vmem:[#allocation5 + $0x348] sm:$0xff]
    %v203 = vld [vmem:[#allocation5 + $0x350] sm:$0xff]
    %v204 = vld [vmem:[#allocation5 + $0x358] sm:$0xff]
    %v205 = vld [vmem:[#allocation5 + $0x360] sm:$0xff]
    %v206 = vld [vmem:[#allocation5 + $0x368] sm:$0xff]
    %v207 = vld [vmem:[#allocation5 + $0x370] sm:$0xff]
    %v208 = vld [vmem:[#allocation5 + $0x378] sm:$0xff]
    %v209 = vld [vmem:[#allocation5 + $0x380] sm:$0xff]
    %v210 = vld [vmem:[#allocation5 + $0x388] sm:$0xff]
    %v211 = vld [vmem:[#allocation5 + $0x390] sm:$0xff]
    %v212 = vld [vmem:[#allocation5 + $0x398] sm:$0xff]
    %v213 = vld [vmem:[#allocation5 + $0x3a0] sm:$0xff]
    %v214 = vld [vmem:[#allocation5 + $0x3a8] sm:$0xff]
    %v215 = vld [vmem:[#allocation5 + $0x3b0] sm:$0xff]
    %v216 = vld [vmem:[#allocation5 + $0x3b8] sm:$0xff]
    %v217 = vld [vmem:[#allocation5 + $0x3c0] sm:$0xff]
    %v218 = vld [vmem:[#allocation5 + $0x3c8] sm:$0xff]
    %v219 = vld [vmem:[#allocation5 + $0x3d0] sm:$0xff]
    %v220 = vld [vmem:[#allocation5 + $0x3d8] sm:$0xff]
    %v221 = vld [vmem:[#allocation5 + $0x3e0] sm:$0xff]
    %v222 = vld [vmem:[#allocation5 + $0x3e8] sm:$0xff]
    %v223 = vld [vmem:[#allocation5 + $0x3f0] sm:$0xff]
    %v224 = vld [vmem:[#allocation5 + $0x3f8] sm:$0xff]
    %v225 = vld [vmem:[%s2] sm:$0x3]
    %v227 = vlaneseq
    %v228 = vshrl.u32 %v227, 7
    %v229 = vsub.s32 0, %v228
    %v230 = vrot.slane %v225, %v229
    %v231 = vlaneseq
    %v232 = vshrl.u32 %v231, 7
    %v233 = vsub.s32 1, %v232
    %v234 = vrot.slane %v225, %v233
    %v365 = vunpack.c.l.b16 %v97
    %v366 = vunpack.c.h.b16 %v97
    %v367 = vunpack.c.l.b16 %v98
    %v368 = vunpack.c.h.b16 %v98
    %v369 = vunpack.c.l.b16 %v99
    %v370 = vunpack.c.h.b16 %v99
    %v371 = vunpack.c.l.b16 %v100
    %v372 = vunpack.c.h.b16 %v100
    %v373 = vunpack.c.l.b16 %v101
    %v374 = vunpack.c.h.b16 %v101
    %v375 = vunpack.c.l.b16 %v102
    %v376 = vunpack.c.h.b16 %v102
    %v377 = vunpack.c.l.b16 %v103
    %v378 = vunpack.c.h.b16 %v103
    %v379 = vunpack.c.l.b16 %v104
    %v380 = vunpack.c.h.b16 %v104
    %v381 = vunpack.c.l.b16 %v105
    %v382 = vunpack.c.h.b16 %v105
    %v383 = vunpack.c.l.b16 %v106
    %v384 = vunpack.c.h.b16 %v106
    %v385 = vunpack.c.l.b16 %v107
    %v386 = vunpack.c.h.b16 %v107
    %v387 = vunpack.c.l.b16 %v108
    %v388 = vunpack.c.h.b16 %v108
    %v389 = vunpack.c.l.b16 %v109
    %v390 = vunpack.c.h.b16 %v109
    %v391 = vunpack.c.l.b16 %v110
    %v392 = vunpack.c.h.b16 %v110
    %v393 = vunpack.c.l.b16 %v111
    %v394 = vunpack.c.h.b16 %v111
    %v395 = vunpack.c.l.b16 %v112
    %v396 = vunpack.c.h.b16 %v112
    %v397 = vunpack.c.l.b16 %v113
    %v398 = vunpack.c.h.b16 %v113
    %v399 = vunpack.c.l.b16 %v114
    %v400 = vunpack.c.h.b16 %v114
    %v401 = vunpack.c.l.b16 %v115
    %v402 = vunpack.c.h.b16 %v115
    %v403 = vunpack.c.l.b16 %v116
    %v404 = vunpack.c.h.b16 %v116
    %v405 = vunpack.c.l.b16 %v117
    %v406 = vunpack.c.h.b16 %v117
    %v407 = vunpack.c.l.b16 %v118
    %v408 = vunpack.c.h.b16 %v118
    %v409 = vunpack.c.l.b16 %v119
    %v410 = vunpack.c.h.b16 %v119
    %v411 = vunpack.c.l.b16 %v120
    %v412 = vunpack.c.h.b16 %v120
    %v413 = vunpack.c.l.b16 %v121
    %v414 = vunpack.c.h.b16 %v121
    %v415 = vunpack.c.l.b16 %v122
    %v416 = vunpack.c.h.b16 %v122
    %v417 = vunpack.c.l.b16 %v123
    %v418 = vunpack.c.h.b16 %v123
    %v419 = vunpack.c.l.b16 %v124
    %v420 = vunpack.c.h.b16 %v124
    %v421 = vunpack.c.l.b16 %v125
    %v422 = vunpack.c.h.b16 %v125
    %v423 = vunpack.c.l.b16 %v126
    %v424 = vunpack.c.h.b16 %v126
    %v425 = vunpack.c.l.b16 %v127
    %v426 = vunpack.c.h.b16 %v127
    %v427 = vunpack.c.l.b16 %v128
    %v428 = vunpack.c.h.b16 %v128
    %v429 = vunpack.c.l.b16 %v129
    %v430 = vunpack.c.h.b16 %v129
    %v431 = vunpack.c.l.b16 %v130
    %v432 = vunpack.c.h.b16 %v130
    %v433 = vunpack.c.l.b16 %v131
    %v434 = vunpack.c.h.b16 %v131
    %v435 = vunpack.c.l.b16 %v132
    %v436 = vunpack.c.h.b16 %v132
    %v437 = vunpack.c.l.b16 %v133
    %v438 = vunpack.c.h.b16 %v133
    %v439 = vunpack.c.l.b16 %v134
    %v440 = vunpack.c.h.b16 %v134
    %v441 = vunpack.c.l.b16 %v135
    %v442 = vunpack.c.h.b16 %v135
    %v443 = vunpack.c.l.b16 %v136
    %v444 = vunpack.c.h.b16 %v136
    %v445 = vunpack.c.l.b16 %v137
    %v446 = vunpack.c.h.b16 %v137
    %v447 = vunpack.c.l.b16 %v138
    %v448 = vunpack.c.h.b16 %v138
    %v449 = vunpack.c.l.b16 %v139
    %v450 = vunpack.c.h.b16 %v139
    %v451 = vunpack.c.l.b16 %v140
    %v452 = vunpack.c.h.b16 %v140
    %v453 = vunpack.c.l.b16 %v141
    %v454 = vunpack.c.h.b16 %v141
    %v455 = vunpack.c.l.b16 %v142
    %v456 = vunpack.c.h.b16 %v142
    %v457 = vunpack.c.l.b16 %v143
    %v458 = vunpack.c.h.b16 %v143
    %v459 = vunpack.c.l.b16 %v144
    %v460 = vunpack.c.h.b16 %v144
    %v461 = vunpack.c.l.b16 %v145
    %v462 = vunpack.c.h.b16 %v145
    %v463 = vunpack.c.l.b16 %v146
    %v464 = vunpack.c.h.b16 %v146
    %v465 = vunpack.c.l.b16 %v147
    %v466 = vunpack.c.h.b16 %v147
    %v467 = vunpack.c.l.b16 %v148
    %v468 = vunpack.c.h.b16 %v148
    %v469 = vunpack.c.l.b16 %v149
    %v470 = vunpack.c.h.b16 %v149
    %v471 = vunpack.c.l.b16 %v150
    %v472 = vunpack.c.h.b16 %v150
    %v473 = vunpack.c.l.b16 %v151
    %v474 = vunpack.c.h.b16 %v151
    %v475 = vunpack.c.l.b16 %v152
    %v476 = vunpack.c.h.b16 %v152
    %v477 = vunpack.c.l.b16 %v153
    %v478 = vunpack.c.h.b16 %v153
    %v479 = vunpack.c.l.b16 %v154
    %v480 = vunpack.c.h.b16 %v154
    %v481 = vunpack.c.l.b16 %v155
    %v482 = vunpack.c.h.b16 %v155
    %v483 = vunpack.c.l.b16 %v156
    %v484 = vunpack.c.h.b16 %v156
    %v485 = vunpack.c.l.b16 %v157
    %v486 = vunpack.c.h.b16 %v157
    %v487 = vunpack.c.l.b16 %v158
    %v488 = vunpack.c.h.b16 %v158
    %v489 = vunpack.c.l.b16 %v159
    %v490 = vunpack.c.h.b16 %v159
    %v491 = vunpack.c.l.b16 %v160
    %v492 = vunpack.c.h.b16 %v160
    %v493 = vunpack.c.l.b16 %v161
    %v494 = vunpack.c.h.b16 %v161
    %v495 = vunpack.c.l.b16 %v162
    %v496 = vunpack.c.h.b16 %v162
    %v497 = vunpack.c.l.b16 %v163
    %v498 = vunpack.c.h.b16 %v163
    %v499 = vunpack.c.l.b16 %v164
    %v500 = vunpack.c.h.b16 %v164
    %v501 = vunpack.c.l.b16 %v165
    %v502 = vunpack.c.h.b16 %v165
    %v503 = vunpack.c.l.b16 %v166
    %v504 = vunpack.c.h.b16 %v166
    %v505 = vunpack.c.l.b16 %v167
    %v506 = vunpack.c.h.b16 %v167
    %v507 = vunpack.c.l.b16 %v168
    %v508 = vunpack.c.h.b16 %v168
    %v509 = vunpack.c.l.b16 %v169
    %v510 = vunpack.c.h.b16 %v169
    %v511 = vunpack.c.l.b16 %v170
    %v512 = vunpack.c.h.b16 %v170
    %v513 = vunpack.c.l.b16 %v171
    %v514 = vunpack.c.h.b16 %v171
    %v515 = vunpack.c.l.b16 %v172
    %v516 = vunpack.c.h.b16 %v172
    %v517 = vunpack.c.l.b16 %v173
    %v518 = vunpack.c.h.b16 %v173
    %v519 = vunpack.c.l.b16 %v174
    %v520 = vunpack.c.h.b16 %v174
    %v521 = vunpack.c.l.b16 %v175
    %v522 = vunpack.c.h.b16 %v175
    %v523 = vunpack.c.l.b16 %v176
    %v524 = vunpack.c.h.b16 %v176
    %v525 = vunpack.c.l.b16 %v177
    %v526 = vunpack.c.h.b16 %v177
    %v527 = vunpack.c.l.b16 %v178
    %v528 = vunpack.c.h.b16 %v178
    %v529 = vunpack.c.l.b16 %v179
    %v530 = vunpack.c.h.b16 %v179
    %v531 = vunpack.c.l.b16 %v180
    %v532 = vunpack.c.h.b16 %v180
    %v533 = vunpack.c.l.b16 %v181
    %v534 = vunpack.c.h.b16 %v181
    %v535 = vunpack.c.l.b16 %v182
    %v536 = vunpack.c.h.b16 %v182
    %v537 = vunpack.c.l.b16 %v183
    %v538 = vunpack.c.h.b16 %v183
    %v539 = vunpack.c.l.b16 %v184
    %v540 = vunpack.c.h.b16 %v184
    %v541 = vunpack.c.l.b16 %v185
    %v542 = vunpack.c.h.b16 %v185
    %v543 = vunpack.c.l.b16 %v186
    %v544 = vunpack.c.h.b16 %v186
    %v545 = vunpack.c.l.b16 %v187
    %v546 = vunpack.c.h.b16 %v187
    %v547 = vunpack.c.l.b16 %v188
    %v548 = vunpack.c.h.b16 %v188
    %v549 = vunpack.c.l.b16 %v189
    %v550 = vunpack.c.h.b16 %v189
    %v551 = vunpack.c.l.b16 %v190
    %v552 = vunpack.c.h.b16 %v190
    %v553 = vunpack.c.l.b16 %v191
    %v554 = vunpack.c.h.b16 %v191
    %v555 = vunpack.c.l.b16 %v192
    %v556 = vunpack.c.h.b16 %v192
    %v557 = vunpack.c.l.b16 %v193
    %v558 = vunpack.c.h.b16 %v193
    %v559 = vunpack.c.l.b16 %v194
    %v560 = vunpack.c.h.b16 %v194
    %v561 = vunpack.c.l.b16 %v195
    %v562 = vunpack.c.h.b16 %v195
    %v563 = vunpack.c.l.b16 %v196
    %v564 = vunpack.c.h.b16 %v196
    %v565 = vunpack.c.l.b16 %v197
    %v566 = vunpack.c.h.b16 %v197
    %v567 = vunpack.c.l.b16 %v198
    %v568 = vunpack.c.h.b16 %v198
    %v569 = vunpack.c.l.b16 %v199
    %v570 = vunpack.c.h.b16 %v199
    %v571 = vunpack.c.l.b16 %v200
    %v572 = vunpack.c.h.b16 %v200
    %v573 = vunpack.c.l.b16 %v201
    %v574 = vunpack.c.h.b16 %v201
    %v575 = vunpack.c.l.b16 %v202
    %v576 = vunpack.c.h.b16 %v202
    %v577 = vunpack.c.l.b16 %v203
    %v578 = vunpack.c.h.b16 %v203
    %v579 = vunpack.c.l.b16 %v204
    %v580 = vunpack.c.h.b16 %v204
    %v581 = vunpack.c.l.b16 %v205
    %v582 = vunpack.c.h.b16 %v205
    %v583 = vunpack.c.l.b16 %v206
    %v584 = vunpack.c.h.b16 %v206
    %v585 = vunpack.c.l.b16 %v207
    %v586 = vunpack.c.h.b16 %v207
    %v587 = vunpack.c.l.b16 %v208
    %v588 = vunpack.c.h.b16 %v208
    %v589 = vunpack.c.l.b16 %v209
    %v590 = vunpack.c.h.b16 %v209
    %v591 = vunpack.c.l.b16 %v210
    %v592 = vunpack.c.h.b16 %v210
    %v593 = vunpack.c.l.b16 %v211
    %v594 = vunpack.c.h.b16 %v211
    %v595 = vunpack.c.l.b16 %v212
    %v596 = vunpack.c.h.b16 %v212
    %v597 = vunpack.c.l.b16 %v213
    %v598 = vunpack.c.h.b16 %v213
    %v599 = vunpack.c.l.b16 %v214
    %v600 = vunpack.c.h.b16 %v214
    %v601 = vunpack.c.l.b16 %v215
    %v602 = vunpack.c.h.b16 %v215
    %v603 = vunpack.c.l.b16 %v216
    %v604 = vunpack.c.h.b16 %v216
    %v605 = vunpack.c.l.b16 %v217
    %v606 = vunpack.c.h.b16 %v217
    %v607 = vunpack.c.l.b16 %v218
    %v608 = vunpack.c.h.b16 %v218
    %v609 = vunpack.c.l.b16 %v219
    %v610 = vunpack.c.h.b16 %v219
    %v611 = vunpack.c.l.b16 %v220
    %v612 = vunpack.c.h.b16 %v220
    %v613 = vunpack.c.l.b16 %v221
    %v614 = vunpack.c.h.b16 %v221
    %v615 = vunpack.c.l.b16 %v222
    %v616 = vunpack.c.h.b16 %v222
    %v617 = vunpack.c.l.b16 %v223
    %v618 = vunpack.c.h.b16 %v223
    %v619 = vunpack.c.l.b16 %v224
    %v620 = vunpack.c.h.b16 %v224
    %v621 = vpack.c.b16 %v367, %v365
    %v622 = vpack.c.b16 %v368, %v366
    %v623 = vpack.c.b16 %v371, %v369
    %v624 = vpack.c.b16 %v372, %v370
    %v625 = vpack.c.b16 %v375, %v373
    %v626 = vpack.c.b16 %v376, %v374
    %v627 = vpack.c.b16 %v379, %v377
    %v628 = vpack.c.b16 %v380, %v378
    %v629 = vpack.c.b16 %v383, %v381
    %v630 = vpack.c.b16 %v384, %v382
    %v631 = vpack.c.b16 %v387, %v385
    %v632 = vpack.c.b16 %v388, %v386
    %v633 = vpack.c.b16 %v391, %v389
    %v634 = vpack.c.b16 %v392, %v390
    %v635 = vpack.c.b16 %v395, %v393
    %v636 = vpack.c.b16 %v396, %v394
    %v637 = vpack.c.b16 %v399, %v397
    %v638 = vpack.c.b16 %v400, %v398
    %v639 = vpack.c.b16 %v403, %v401
    %v640 = vpack.c.b16 %v404, %v402
    %v641 = vpack.c.b16 %v407, %v405
    %v642 = vpack.c.b16 %v408, %v406
    %v643 = vpack.c.b16 %v411, %v409
    %v644 = vpack.c.b16 %v412, %v410
    %v645 = vpack.c.b16 %v415, %v413
    %v646 = vpack.c.b16 %v416, %v414
    %v647 = vpack.c.b16 %v419, %v417
    %v648 = vpack.c.b16 %v420, %v418
    %v649 = vpack.c.b16 %v423, %v421
    %v650 = vpack.c.b16 %v424, %v422
    %v651 = vpack.c.b16 %v427, %v425
    %v652 = vpack.c.b16 %v428, %v426
    %v653 = vpack.c.b16 %v431, %v429
    %v654 = vpack.c.b16 %v432, %v430
    %v655 = vpack.c.b16 %v435, %v433
    %v656 = vpack.c.b16 %v436, %v434
    %v657 = vpack.c.b16 %v439, %v437
    %v658 = vpack.c.b16 %v440, %v438
    %v659 = vpack.c.b16 %v443, %v441
    %v660 = vpack.c.b16 %v444, %v442
    %v661 = vpack.c.b16 %v447, %v445
    %v662 = vpack.c.b16 %v448, %v446
    %v663 = vpack.c.b16 %v451, %v449
    %v664 = vpack.c.b16 %v452, %v450
    %v665 = vpack.c.b16 %v455, %v453
    %v666 = vpack.c.b16 %v456, %v454
    %v667 = vpack.c.b16 %v459, %v457
    %v668 = vpack.c.b16 %v460, %v458
    %v669 = vpack.c.b16 %v463, %v461
    %v670 = vpack.c.b16 %v464, %v462
    %v671 = vpack.c.b16 %v467, %v465
    %v672 = vpack.c.b16 %v468, %v466
    %v673 = vpack.c.b16 %v471, %v469
    %v674 = vpack.c.b16 %v472, %v470
    %v675 = vpack.c.b16 %v475, %v473
    %v676 = vpack.c.b16 %v476, %v474
    %v677 = vpack.c.b16 %v479, %v477
    %v678 = vpack.c.b16 %v480, %v478
    %v679 = vpack.c.b16 %v483, %v481
    %v680 = vpack.c.b16 %v484, %v482
    %v681 = vpack.c.b16 %v487, %v485
    %v682 = vpack.c.b16 %v488, %v486
    %v683 = vpack.c.b16 %v491, %v489
    %v684 = vpack.c.b16 %v492, %v490
    %v685 = vpack.c.b16 %v495, %v493
    %v686 = vpack.c.b16 %v496, %v494
    %v687 = vpack.c.b16 %v499, %v497
    %v688 = vpack.c.b16 %v500, %v498
    %v689 = vpack.c.b16 %v503, %v501
    %v690 = vpack.c.b16 %v504, %v502
    %v691 = vpack.c.b16 %v507, %v505
    %v692 = vpack.c.b16 %v508, %v506
    %v693 = vpack.c.b16 %v511, %v509
    %v694 = vpack.c.b16 %v512, %v510
    %v695 = vpack.c.b16 %v515, %v513
    %v696 = vpack.c.b16 %v516, %v514
    %v697 = vpack.c.b16 %v519, %v517
    %v698 = vpack.c.b16 %v520, %v518
    %v699 = vpack.c.b16 %v523, %v521
    %v700 = vpack.c.b16 %v524, %v522
    %v701 = vpack.c.b16 %v527, %v525
    %v702 = vpack.c.b16 %v528, %v526
    %v703 = vpack.c.b16 %v531, %v529
    %v704 = vpack.c.b16 %v532, %v530
    %v705 = vpack.c.b16 %v535, %v533
    %v706 = vpack.c.b16 %v536, %v534
    %v707 = vpack.c.b16 %v539, %v537
    %v708 = vpack.c.b16 %v540, %v538
    %v709 = vpack.c.b16 %v543, %v541
    %v710 = vpack.c.b16 %v544, %v542
    %v711 = vpack.c.b16 %v547, %v545
    %v712 = vpack.c.b16 %v548, %v546
    %v713 = vpack.c.b16 %v551, %v549
    %v714 = vpack.c.b16 %v552, %v550
    %v715 = vpack.c.b16 %v555, %v553
    %v716 = vpack.c.b16 %v556, %v554
    %v717 = vpack.c.b16 %v559, %v557
    %v718 = vpack.c.b16 %v560, %v558
    %v719 = vpack.c.b16 %v563, %v561
    %v720 = vpack.c.b16 %v564, %v562
    %v721 = vpack.c.b16 %v567, %v565
    %v722 = vpack.c.b16 %v568, %v566
    %v723 = vpack.c.b16 %v571, %v569
    %v724 = vpack.c.b16 %v572, %v570
    %v725 = vpack.c.b16 %v575, %v573
    %v726 = vpack.c.b16 %v576, %v574
    %v727 = vpack.c.b16 %v579, %v577
    %v728 = vpack.c.b16 %v580, %v578
    %v729 = vpack.c.b16 %v583, %v581
    %v730 = vpack.c.b16 %v584, %v582
    %v731 = vpack.c.b16 %v587, %v585
    %v732 = vpack.c.b16 %v588, %v586
    %v733 = vpack.c.b16 %v591, %v589
    %v734 = vpack.c.b16 %v592, %v590
    %v735 = vpack.c.b16 %v595, %v593
    %v736 = vpack.c.b16 %v596, %v594
    %v737 = vpack.c.b16 %v599, %v597
    %v738 = vpack.c.b16 %v600, %v598
    %v739 = vpack.c.b16 %v603, %v601
    %v740 = vpack.c.b16 %v604, %v602
    %v741 = vpack.c.b16 %v607, %v605
    %v742 = vpack.c.b16 %v608, %v606
    %v743 = vpack.c.b16 %v611, %v609
    %v744 = vpack.c.b16 %v612, %v610
    %v745 = vpack.c.b16 %v615, %v613
    %v746 = vpack.c.b16 %v616, %v614
    %v747 = vpack.c.b16 %v619, %v617
    %v748 = vpack.c.b16 %v620, %v618
    %877 = vmatprep.subr.bf16.mxu0 %v622
    %878 = vmatpush1.bf16.msra.mxu0 %v621
    %879 = vmatprep.subr.bf16.mxu0 %v624
    %880 = vmatpush1.bf16.msra.mxu0 %v623
    %881 = vmatprep.subr.bf16.mxu0 %v626
    %882 = vmatpush1.bf16.msra.mxu0 %v625
    %883 = vmatprep.subr.bf16.mxu0 %v628
    %884 = vmatpush1.bf16.msra.mxu0 %v627
    %885 = vmatprep.subr.bf16.mxu0 %v630
    %886 = vmatpush1.bf16.msra.mxu0 %v629
    %887 = vmatprep.subr.bf16.mxu0 %v632
    %888 = vmatpush1.bf16.msra.mxu0 %v631
    %889 = vmatprep.subr.bf16.mxu0 %v634
    %890 = vmatpush1.bf16.msra.mxu0 %v633
    %891 = vmatprep.subr.bf16.mxu0 %v636
    %892 = vmatpush1.bf16.msra.mxu0 %v635
    %893 = vmatprep.subr.bf16.mxu0 %v638
    %894 = vmatpush1.bf16.msra.mxu0 %v637
    %895 = vmatprep.subr.bf16.mxu0 %v640
    %896 = vmatpush1.bf16.msra.mxu0 %v639
    %897 = vmatprep.subr.bf16.mxu0 %v642
    %898 = vmatpush1.bf16.msra.mxu0 %v641
    %899 = vmatprep.subr.bf16.mxu0 %v644
    %900 = vmatpush1.bf16.msra.mxu0 %v643
    %901 = vmatprep.subr.bf16.mxu0 %v646
    %902 = vmatpush1.bf16.msra.mxu0 %v645
    %903 = vmatprep.subr.bf16.mxu0 %v648
    %904 = vmatpush1.bf16.msra.mxu0 %v647
    %905 = vmatprep.subr.bf16.mxu0 %v650
    %906 = vmatpush1.bf16.msra.mxu0 %v649
    %907 = vmatprep.subr.bf16.mxu0 %v652
    %908 = vmatpush1.bf16.msra.mxu0 %v651
    %909 = vmatprep.mubr.bf16.mxu0 %v90
    %910 = vmatmul.mubr.bf16.gmra.mrb[0].mxu0 %v89
    %v911 = vpop.f32.mrb[0].mxu0
    %v912 = vadd.f32 %v230, %v911
    %v913 = vpop.f32.mrb[0].mxu0
    %v914 = vadd.f32 %v234, %v913
    %v915 = vpop.f32.mrb[0].mxu0
    %v916 = vpop.f32.mrb[0].mxu0
    %917 = vdwg.mxu0
    %918 = vmatprep.subr.bf16.mxu0 %v654
    %919 = vmatpush1.bf16.msra.mxu0 %v653
    %920 = vmatprep.subr.bf16.mxu0 %v656
    %921 = vmatpush1.bf16.msra.mxu0 %v655
    %922 = vmatprep.subr.bf16.mxu0 %v658
    %923 = vmatpush1.bf16.msra.mxu0 %v657
    %924 = vmatprep.subr.bf16.mxu0 %v660
    %925 = vmatpush1.bf16.msra.mxu0 %v659
    %926 = vmatprep.subr.bf16.mxu0 %v662
    %927 = vmatpush1.bf16.msra.mxu0 %v661
    %928 = vmatprep.subr.bf16.mxu0 %v664
    %929 = vmatpush1.bf16.msra.mxu0 %v663
    %930 = vmatprep.subr.bf16.mxu0 %v666
    %931 = vmatpush1.bf16.msra.mxu0 %v665
    %932 = vmatprep.subr.bf16.mxu0 %v668
    %933 = vmatpush1.bf16.msra.mxu0 %v667
    %934 = vmatprep.subr.bf16.mxu0 %v670
    %935 = vmatpush1.bf16.msra.mxu0 %v669
    %936 = vmatprep.subr.bf16.mxu0 %v672
    %937 = vmatpush1.bf16.msra.mxu0 %v671
    %938 = vmatprep.subr.bf16.mxu0 %v674
    %939 = vmatpush1.bf16.msra.mxu0 %v673
    %940 = vmatprep.subr.bf16.mxu0 %v676
    %941 = vmatpush1.bf16.msra.mxu0 %v675
    %942 = vmatprep.subr.bf16.mxu0 %v678
    %943 = vmatpush1.bf16.msra.mxu0 %v677
    %944 = vmatprep.subr.bf16.mxu0 %v680
    %945 = vmatpush1.bf16.msra.mxu0 %v679
    %946 = vmatprep.subr.bf16.mxu0 %v682
    %947 = vmatpush1.bf16.msra.mxu0 %v681
    %948 = vmatprep.subr.bf16.mxu0 %v684
    %949 = vmatpush1.bf16.msra.mxu0 %v683
    %950 = vmatprep.mubr.bf16.mxu0 %v92
    %951 = vmatmul.mubr.bf16.gmra.mrb[0].mxu0 %v91
    %v952 = vpop.f32.mrb[0].mxu0
    %v953 = vadd.f32 %v912, %v952
    %v954 = vpop.f32.mrb[0].mxu0
    %v955 = vadd.f32 %v914, %v954
    %v956 = vpop.f32.mrb[0].mxu0
    %v957 = vpop.f32.mrb[0].mxu0
    %958 = vdwg.mxu0
    %959 = vmatprep.subr.bf16.mxu0 %v686
    %960 = vmatpush1.bf16.msra.mxu0 %v685
    %961 = vmatprep.subr.bf16.mxu0 %v688
    %962 = vmatpush1.bf16.msra.mxu0 %v687
    %963 = vmatprep.subr.bf16.mxu0 %v690
    %964 = vmatpush1.bf16.msra.mxu0 %v689
    %965 = vmatprep.subr.bf16.mxu0 %v692
    %966 = vmatpush1.bf16.msra.mxu0 %v691
    %967 = vmatprep.subr.bf16.mxu0 %v694
    %968 = vmatpush1.bf16.msra.mxu0 %v693
    %969 = vmatprep.subr.bf16.mxu0 %v696
    %970 = vmatpush1.bf16.msra.mxu0 %v695
    %971 = vmatprep.subr.bf16.mxu0 %v698
    %972 = vmatpush1.bf16.msra.mxu0 %v697
    %973 = vmatprep.subr.bf16.mxu0 %v700
    %974 = vmatpush1.bf16.msra.mxu0 %v699
    %975 = vmatprep.subr.bf16.mxu0 %v702
    %976 = vmatpush1.bf16.msra.mxu0 %v701
    %977 = vmatprep.subr.bf16.mxu0 %v704
    %978 = vmatpush1.bf16.msra.mxu0 %v703
    %979 = vmatprep.subr.bf16.mxu0 %v706
    %980 = vmatpush1.bf16.msra.mxu0 %v705
    %981 = vmatprep.subr.bf16.mxu0 %v708
    %982 = vmatpush1.bf16.msra.mxu0 %v707
    %983 = vmatprep.subr.bf16.mxu0 %v710
    %984 = vmatpush1.bf16.msra.mxu0 %v709
    %985 = vmatprep.subr.bf16.mxu0 %v712
    %986 = vmatpush1.bf16.msra.mxu0 %v711
    %987 = vmatprep.subr.bf16.mxu0 %v714
    %988 = vmatpush1.bf16.msra.mxu0 %v713
    %989 = vmatprep.subr.bf16.mxu0 %v716
    %990 = vmatpush1.bf16.msra.mxu0 %v715
    %991 = vmatprep.mubr.bf16.mxu0 %v94
    %992 = vmatmul.mubr.bf16.gmra.mrb[0].mxu0 %v93
    %v993 = vpop.f32.mrb[0].mxu0
    %v994 = vadd.f32 %v953, %v993
    %v995 = vpop.f32.mrb[0].mxu0
    %v996 = vadd.f32 %v955, %v995
    %v997 = vpop.f32.mrb[0].mxu0
    %v998 = vpop.f32.mrb[0].mxu0
    %999 = vdwg.mxu0
    %1000 = vmatprep.subr.bf16.mxu0 %v718
    %1001 = vmatpush1.bf16.msra.mxu0 %v717
    %1002 = vmatprep.subr.bf16.mxu0 %v720
    %1003 = vmatpush1.bf16.msra.mxu0 %v719
    %1004 = vmatprep.subr.bf16.mxu0 %v722
    %1005 = vmatpush1.bf16.msra.mxu0 %v721
    %1006 = vmatprep.subr.bf16.mxu0 %v724
    %1007 = vmatpush1.bf16.msra.mxu0 %v723
    %1008 = vmatprep.subr.bf16.mxu0 %v726
    %1009 = vmatpush1.bf16.msra.mxu0 %v725
    %1010 = vmatprep.subr.bf16.mxu0 %v728
    %1011 = vmatpush1.bf16.msra.mxu0 %v727
    %1012 = vmatprep.subr.bf16.mxu0 %v730
    %1013 = vmatpush1.bf16.msra.mxu0 %v729
    %1014 = vmatprep.subr.bf16.mxu0 %v732
    %1015 = vmatpush1.bf16.msra.mxu0 %v731
    %1016 = vmatprep.subr.bf16.mxu0 %v734
    %1017 = vmatpush1.bf16.msra.mxu0 %v733
    %1018 = vmatprep.subr.bf16.mxu0 %v736
    %1019 = vmatpush1.bf16.msra.mxu0 %v735
    %1020 = vmatprep.subr.bf16.mxu0 %v738
    %1021 = vmatpush1.bf16.msra.mxu0 %v737
    %1022 = vmatprep.subr.bf16.mxu0 %v740
    %1023 = vmatpush1.bf16.msra.mxu0 %v739
    %1024 = vmatprep.subr.bf16.mxu0 %v742
    %1025 = vmatpush1.bf16.msra.mxu0 %v741
    %1026 = vmatprep.subr.bf16.mxu0 %v744
    %1027 = vmatpush1.bf16.msra.mxu0 %v743
    %1028 = vmatprep.subr.bf16.mxu0 %v746
    %1029 = vmatpush1.bf16.msra.mxu0 %v745
    %1030 = vmatprep.subr.bf16.mxu0 %v748
    %1031 = vmatpush1.bf16.msra.mxu0 %v747
    %1032 = vmatprep.mubr.bf16.mxu0 %v96
    %1033 = vmatmul.mubr.bf16.gmra.mrb[0].mxu0 %v95
    %v1034 = vpop.f32.mrb[0].mxu0
    %v1035 = vadd.f32 %v994, %v1034
    %v1036 = vpop.f32.mrb[0].mxu0
    %v1037 = vadd.f32 %v996, %v1036
    %v1038 = vpop.f32.mrb[0].mxu0
    %v1039 = vpop.f32.mrb[0].mxu0
    %1040 = vdwg.mxu0
    %v1041 = vmax.f32 %v1035, 0.0
    %v1042 = vmax.f32 %v1037, 0.0
    %v1043 = vpack.c.bf16 %v1041, %v1041
    %v1044 = vpack.c.bf16 %v1042, %v1042
    %v1045 = vld [vmem:[#allocation7] sm:$0xff]
    %v1046 = vld [vmem:[#allocation7 + $0x8] sm:$0xff]
    %v1047 = vld [vmem:[#allocation7 + $0x10] sm:$0xff]
    %v1048 = vld [vmem:[#allocation7 + $0x18] sm:$0xff]
    %v1049 = vld [vmem:[#allocation7 + $0x20] sm:$0xff]
    %v1050 = vld [vmem:[#allocation7 + $0x28] sm:$0xff]
    %v1051 = vld [vmem:[#allocation7 + $0x30] sm:$0xff]
    %v1052 = vld [vmem:[#allocation7 + $0x38] sm:$0xff]
    %v1053 = vld [vmem:[#allocation7 + $0x40] sm:$0xff]
    %v1054 = vld [vmem:[#allocation7 + $0x48] sm:$0xff]
    %v1055 = vld [vmem:[#allocation7 + $0x50] sm:$0xff]
    %v1056 = vld [vmem:[#allocation7 + $0x58] sm:$0xff]
    %v1057 = vld [vmem:[#allocation7 + $0x60] sm:$0xff]
    %v1058 = vld [vmem:[#allocation7 + $0x68] sm:$0xff]
    %v1059 = vld [vmem:[#allocation7 + $0x70] sm:$0xff]
    %v1060 = vld [vmem:[#allocation7 + $0x78] sm:$0xff]
    %v1061 = vld [vmem:[#allocation7 + $0x80] sm:$0xff]
    %v1062 = vld [vmem:[#allocation7 + $0x88] sm:$0xff]
    %v1063 = vld [vmem:[#allocation7 + $0x90] sm:$0xff]
    %v1064 = vld [vmem:[#allocation7 + $0x98] sm:$0xff]
    %v1065 = vld [vmem:[#allocation7 + $0xa0] sm:$0xff]
    %v1066 = vld [vmem:[#allocation7 + $0xa8] sm:$0xff]
    %v1067 = vld [vmem:[#allocation7 + $0xb0] sm:$0xff]
    %v1068 = vld [vmem:[#allocation7 + $0xb8] sm:$0xff]
    %v1069 = vld [vmem:[#allocation7 + $0xc0] sm:$0xff]
    %v1070 = vld [vmem:[#allocation7 + $0xc8] sm:$0xff]
    %v1071 = vld [vmem:[#allocation7 + $0xd0] sm:$0xff]
    %v1072 = vld [vmem:[#allocation7 + $0xd8] sm:$0xff]
    %v1073 = vld [vmem:[#allocation7 + $0xe0] sm:$0xff]
    %v1074 = vld [vmem:[#allocation7 + $0xe8] sm:$0xff]
    %v1075 = vld [vmem:[#allocation7 + $0xf0] sm:$0xff]
    %v1076 = vld [vmem:[#allocation7 + $0xf8] sm:$0xff]
    %v1077 = vld [vmem:[%s4] sm:$0x3]
    %v1079 = vlaneseq
    %v1080 = vshrl.u32 %v1079, 7
    %v1081 = vsub.s32 0, %v1080
    %v1082 = vrot.slane %v1077, %v1081
    %v1083 = vlaneseq
    %v1084 = vshrl.u32 %v1083, 7
    %v1085 = vsub.s32 1, %v1084
    %v1086 = vrot.slane %v1077, %v1085
    %v1121 = vunpack.c.l.b16 %v1045
    %v1122 = vunpack.c.h.b16 %v1045
    %v1123 = vunpack.c.l.b16 %v1046
    %v1124 = vunpack.c.h.b16 %v1046
    %v1125 = vunpack.c.l.b16 %v1047
    %v1126 = vunpack.c.h.b16 %v1047
    %v1127 = vunpack.c.l.b16 %v1048
    %v1128 = vunpack.c.h.b16 %v1048
    %v1129 = vunpack.c.l.b16 %v1049
    %v1130 = vunpack.c.h.b16 %v1049
    %v1131 = vunpack.c.l.b16 %v1050
    %v1132 = vunpack.c.h.b16 %v1050
    %v1133 = vunpack.c.l.b16 %v1051
    %v1134 = vunpack.c.h.b16 %v1051
    %v1135 = vunpack.c.l.b16 %v1052
    %v1136 = vunpack.c.h.b16 %v1052
    %v1137 = vunpack.c.l.b16 %v1053
    %v1138 = vunpack.c.h.b16 %v1053
    %v1139 = vunpack.c.l.b16 %v1054
    %v1140 = vunpack.c.h.b16 %v1054
    %v1141 = vunpack.c.l.b16 %v1055
    %v1142 = vunpack.c.h.b16 %v1055
    %v1143 = vunpack.c.l.b16 %v1056
    %v1144 = vunpack.c.h.b16 %v1056
    %v1145 = vunpack.c.l.b16 %v1057
    %v1146 = vunpack.c.h.b16 %v1057
    %v1147 = vunpack.c.l.b16 %v1058
    %v1148 = vunpack.c.h.b16 %v1058
    %v1149 = vunpack.c.l.b16 %v1059
    %v1150 = vunpack.c.h.b16 %v1059
    %v1151 = vunpack.c.l.b16 %v1060
    %v1152 = vunpack.c.h.b16 %v1060
    %v1153 = vunpack.c.l.b16 %v1061
    %v1154 = vunpack.c.h.b16 %v1061
    %v1155 = vunpack.c.l.b16 %v1062
    %v1156 = vunpack.c.h.b16 %v1062
    %v1157 = vunpack.c.l.b16 %v1063
    %v1158 = vunpack.c.h.b16 %v1063
    %v1159 = vunpack.c.l.b16 %v1064
    %v1160 = vunpack.c.h.b16 %v1064
    %v1161 = vunpack.c.l.b16 %v1065
    %v1162 = vunpack.c.h.b16 %v1065
    %v1163 = vunpack.c.l.b16 %v1066
    %v1164 = vunpack.c.h.b16 %v1066
    %v1165 = vunpack.c.l.b16 %v1067
    %v1166 = vunpack.c.h.b16 %v1067
    %v1167 = vunpack.c.l.b16 %v1068
    %v1168 = vunpack.c.h.b16 %v1068
    %v1169 = vunpack.c.l.b16 %v1069
    %v1170 = vunpack.c.h.b16 %v1069
    %v1171 = vunpack.c.l.b16 %v1070
    %v1172 = vunpack.c.h.b16 %v1070
    %v1173 = vunpack.c.l.b16 %v1071
    %v1174 = vunpack.c.h.b16 %v1071
    %v1175 = vunpack.c.l.b16 %v1072
    %v1176 = vunpack.c.h.b16 %v1072
    %v1177 = vunpack.c.l.b16 %v1073
    %v1178 = vunpack.c.h.b16 %v1073
    %v1179 = vunpack.c.l.b16 %v1074
    %v1180 = vunpack.c.h.b16 %v1074
    %v1181 = vunpack.c.l.b16 %v1075
    %v1182 = vunpack.c.h.b16 %v1075
    %v1183 = vunpack.c.l.b16 %v1076
    %v1184 = vunpack.c.h.b16 %v1076
    %v1185 = vpack.c.b16 %v1123, %v1121
    %v1186 = vpack.c.b16 %v1124, %v1122
    %v1187 = vpack.c.b16 %v1127, %v1125
    %v1188 = vpack.c.b16 %v1128, %v1126
    %v1189 = vpack.c.b16 %v1131, %v1129
    %v1190 = vpack.c.b16 %v1132, %v1130
    %v1191 = vpack.c.b16 %v1135, %v1133
    %v1192 = vpack.c.b16 %v1136, %v1134
    %v1193 = vpack.c.b16 %v1139, %v1137
    %v1194 = vpack.c.b16 %v1140, %v1138
    %v1195 = vpack.c.b16 %v1143, %v1141
    %v1196 = vpack.c.b16 %v1144, %v1142
    %v1197 = vpack.c.b16 %v1147, %v1145
    %v1198 = vpack.c.b16 %v1148, %v1146
    %v1199 = vpack.c.b16 %v1151, %v1149
    %v1200 = vpack.c.b16 %v1152, %v1150
    %v1201 = vpack.c.b16 %v1155, %v1153
    %v1202 = vpack.c.b16 %v1156, %v1154
    %v1203 = vpack.c.b16 %v1159, %v1157
    %v1204 = vpack.c.b16 %v1160, %v1158
    %v1205 = vpack.c.b16 %v1163, %v1161
    %v1206 = vpack.c.b16 %v1164, %v1162
    %v1207 = vpack.c.b16 %v1167, %v1165
    %v1208 = vpack.c.b16 %v1168, %v1166
    %v1209 = vpack.c.b16 %v1171, %v1169
    %v1210 = vpack.c.b16 %v1172, %v1170
    %v1211 = vpack.c.b16 %v1175, %v1173
    %v1212 = vpack.c.b16 %v1176, %v1174
    %v1213 = vpack.c.b16 %v1179, %v1177
    %v1214 = vpack.c.b16 %v1180, %v1178
    %v1215 = vpack.c.b16 %v1183, %v1181
    %v1216 = vpack.c.b16 %v1184, %v1182
    %1249 = vmatprep.subr.bf16.mxu0 %v1186
    %1250 = vmatpush1.bf16.msra.mxu0 %v1185
    %1251 = vmatprep.subr.bf16.mxu0 %v1188
    %1252 = vmatpush1.bf16.msra.mxu0 %v1187
    %1253 = vmatprep.subr.bf16.mxu0 %v1190
    %1254 = vmatpush1.bf16.msra.mxu0 %v1189
    %1255 = vmatprep.subr.bf16.mxu0 %v1192
    %1256 = vmatpush1.bf16.msra.mxu0 %v1191
    %1257 = vmatprep.subr.bf16.mxu0 %v1194
    %1258 = vmatpush1.bf16.msra.mxu0 %v1193
    %1259 = vmatprep.subr.bf16.mxu0 %v1196
    %1260 = vmatpush1.bf16.msra.mxu0 %v1195
    %1261 = vmatprep.subr.bf16.mxu0 %v1198
    %1262 = vmatpush1.bf16.msra.mxu0 %v1197
    %1263 = vmatprep.subr.bf16.mxu0 %v1200
    %1264 = vmatpush1.bf16.msra.mxu0 %v1199
    %1265 = vmatprep.subr.bf16.mxu0 %v1202
    %1266 = vmatpush1.bf16.msra.mxu0 %v1201
    %1267 = vmatprep.subr.bf16.mxu0 %v1204
    %1268 = vmatpush1.bf16.msra.mxu0 %v1203
    %1269 = vmatprep.subr.bf16.mxu0 %v1206
    %1270 = vmatpush1.bf16.msra.mxu0 %v1205
    %1271 = vmatprep.subr.bf16.mxu0 %v1208
    %1272 = vmatpush1.bf16.msra.mxu0 %v1207
    %1273 = vmatprep.subr.bf16.mxu0 %v1210
    %1274 = vmatpush1.bf16.msra.mxu0 %v1209
    %1275 = vmatprep.subr.bf16.mxu0 %v1212
    %1276 = vmatpush1.bf16.msra.mxu0 %v1211
    %1277 = vmatprep.subr.bf16.mxu0 %v1214
    %1278 = vmatpush1.bf16.msra.mxu0 %v1213
    %1279 = vmatprep.subr.bf16.mxu0 %v1216
    %1280 = vmatpush1.bf16.msra.mxu0 %v1215
    %1281 = vmatprep.mubr.bf16.mxu0 %v1044
    %1282 = vmatmul.mubr.bf16.gmra.mrb[0].mxu0 %v1043
    %v1283 = vpop.f32.mrb[0].mxu0
    %v1284 = vadd.f32 %v1082, %v1283
    %v1285 = vpop.f32.mrb[0].mxu0
    %v1286 = vadd.f32 %v1086, %v1285
    %v1287 = vpop.f32.mrb[0].mxu0
    %v1288 = vpop.f32.mrb[0].mxu0
    %1289 = vdwg.mxu0
    %v1290 = vmax.f32 %v1284, 0.0
    %v1291 = vmax.f32 %v1286, 0.0
    %v1292 = vpack.c.bf16 %v1290, %v1290
    %v1293 = vpack.c.bf16 %v1291, %v1291
    %v1294 = vld [vmem:[#allocation8] sm:$0xf]
    %v1295 = vld [vmem:[#allocation8 + $0x4] sm:$0xf]
    %v1296 = vld [vmem:[#allocation8 + $0x8] sm:$0xf]
    %v1297 = vld [vmem:[#allocation8 + $0xc] sm:$0xf]
    %v1298 = vld [vmem:[#allocation8 + $0x10] sm:$0xf]
    %v1299 = vld [vmem:[#allocation8 + $0x14] sm:$0xf]
    %v1300 = vld [vmem:[#allocation8 + $0x18] sm:$0xf]
    %v1301 = vld [vmem:[#allocation8 + $0x1c] sm:$0xf]
    %v1302 = vld [vmem:[#allocation8 + $0x20] sm:$0xf]
    %v1303 = vld [vmem:[#allocation8 + $0x24] sm:$0xf]
    %v1304 = vld [vmem:[#allocation8 + $0x28] sm:$0xf]
    %v1305 = vld [vmem:[#allocation8 + $0x2c] sm:$0xf]
    %v1306 = vld [vmem:[#allocation8 + $0x30] sm:$0xf]
    %v1307 = vld [vmem:[#allocation8 + $0x34] sm:$0xf]
    %v1308 = vld [vmem:[#allocation8 + $0x38] sm:$0xf]
    %v1309 = vld [vmem:[#allocation8 + $0x3c] sm:$0xf]
    %v1310 = vld [vmem:[#allocation8 + $0x40] sm:$0xf]
    %v1311 = vld [vmem:[#allocation8 + $0x44] sm:$0xf]
    %v1312 = vld [vmem:[#allocation8 + $0x48] sm:$0xf]
    %v1313 = vld [vmem:[#allocation8 + $0x4c] sm:$0xf]
    %v1314 = vld [vmem:[#allocation8 + $0x50] sm:$0xf]
    %v1315 = vld [vmem:[#allocation8 + $0x54] sm:$0xf]
    %v1316 = vld [vmem:[#allocation8 + $0x58] sm:$0xf]
    %v1317 = vld [vmem:[#allocation8 + $0x5c] sm:$0xf]
    %v1318 = vld [vmem:[#allocation8 + $0x60] sm:$0xf]
    %v1319 = vld [vmem:[#allocation8 + $0x64] sm:$0xf]
    %v1320 = vld [vmem:[#allocation8 + $0x68] sm:$0xf]
    %v1321 = vld [vmem:[#allocation8 + $0x6c] sm:$0xf]
    %v1322 = vld [vmem:[#allocation8 + $0x70] sm:$0xf]
    %v1323 = vld [vmem:[#allocation8 + $0x74] sm:$0xf]
    %v1324 = vld [vmem:[#allocation8 + $0x78] sm:$0xf]
    %v1325 = vld [vmem:[#allocation8 + $0x7c] sm:$0xf]
    %v1326 = vld [vmem:[%s6] sm:$0x1]
    %v1328 = vlaneseq
    %v1329 = vshrl.u32 %v1328, 7
    %v1330 = vsub.s32 0, %v1329
    %v1331 = vrot.slane %v1326, %v1330
    %v1365 = vunpack.c.l.b16 %v1294
    %v1366 = vunpack.c.l.b16 %v1295
    %v1367 = vunpack.c.l.b16 %v1296
    %v1368 = vunpack.c.l.b16 %v1297
    %v1369 = vunpack.c.l.b16 %v1298
    %v1370 = vunpack.c.l.b16 %v1299
    %v1371 = vunpack.c.l.b16 %v1300
    %v1372 = vunpack.c.l.b16 %v1301
    %v1373 = vunpack.c.l.b16 %v1302
    %v1374 = vunpack.c.l.b16 %v1303
    %v1375 = vunpack.c.l.b16 %v1304
    %v1376 = vunpack.c.l.b16 %v1305
    %v1377 = vunpack.c.l.b16 %v1306
    %v1378 = vunpack.c.l.b16 %v1307
    %v1379 = vunpack.c.l.b16 %v1308
    %v1380 = vunpack.c.l.b16 %v1309
    %v1381 = vunpack.c.l.b16 %v1310
    %v1382 = vunpack.c.l.b16 %v1311
    %v1383 = vunpack.c.l.b16 %v1312
    %v1384 = vunpack.c.l.b16 %v1313
    %v1385 = vunpack.c.l.b16 %v1314
    %v1386 = vunpack.c.l.b16 %v1315
    %v1387 = vunpack.c.l.b16 %v1316
    %v1388 = vunpack.c.l.b16 %v1317
    %v1389 = vunpack.c.l.b16 %v1318
    %v1390 = vunpack.c.l.b16 %v1319
    %v1391 = vunpack.c.l.b16 %v1320
    %v1392 = vunpack.c.l.b16 %v1321
    %v1393 = vunpack.c.l.b16 %v1322
    %v1394 = vunpack.c.l.b16 %v1323
    %v1395 = vunpack.c.l.b16 %v1324
    %v1396 = vunpack.c.l.b16 %v1325
    %v1397 = vpack.c.b16 %v1366, %v1365
    %v1398 = vpack.c.b16 %v1368, %v1367
    %v1399 = vpack.c.b16 %v1370, %v1369
    %v1400 = vpack.c.b16 %v1372, %v1371
    %v1401 = vpack.c.b16 %v1374, %v1373
    %v1402 = vpack.c.b16 %v1376, %v1375
    %v1403 = vpack.c.b16 %v1378, %v1377
    %v1404 = vpack.c.b16 %v1380, %v1379
    %v1405 = vpack.c.b16 %v1382, %v1381
    %v1406 = vpack.c.b16 %v1384, %v1383
    %v1407 = vpack.c.b16 %v1386, %v1385
    %v1408 = vpack.c.b16 %v1388, %v1387
    %v1409 = vpack.c.b16 %v1390, %v1389
    %v1410 = vpack.c.b16 %v1392, %v1391
    %v1411 = vpack.c.b16 %v1394, %v1393
    %v1412 = vpack.c.b16 %v1396, %v1395
    %1429 = vmatprep.subr.bf16.mxu0 0
    %1430 = vmatpush1.bf16.msra.mxu0 %v1397
    %1431 = vmatprep.subr.bf16.mxu0 0
    %1432 = vmatpush1.bf16.msra.mxu0 %v1398
    %1433 = vmatprep.subr.bf16.mxu0 0
    %1434 = vmatpush1.bf16.msra.mxu0 %v1399
    %1435 = vmatprep.subr.bf16.mxu0 0
    %1436 = vmatpush1.bf16.msra.mxu0 %v1400
    %1437 = vmatprep.subr.bf16.mxu0 0
    %1438 = vmatpush1.bf16.msra.mxu0 %v1401
    %1439 = vmatprep.subr.bf16.mxu0 0
    %1440 = vmatpush1.bf16.msra.mxu0 %v1402
    %1441 = vmatprep.subr.bf16.mxu0 0
    %1442 = vmatpush1.bf16.msra.mxu0 %v1403
    %1443 = vmatprep.subr.bf16.mxu0 0
    %1444 = vmatpush1.bf16.msra.mxu0 %v1404
    %1445 = vmatprep.subr.bf16.mxu0 0
    %1446 = vmatpush1.bf16.msra.mxu0 %v1405
    %1447 = vmatprep.subr.bf16.mxu0 0
    %1448 = vmatpush1.bf16.msra.mxu0 %v1406
    %1449 = vmatprep.subr.bf16.mxu0 0
    %1450 = vmatpush1.bf16.msra.mxu0 %v1407
    %1451 = vmatprep.subr.bf16.mxu0 0
    %1452 = vmatpush1.bf16.msra.mxu0 %v1408
    %1453 = vmatprep.subr.bf16.mxu0 0
    %1454 = vmatpush1.bf16.msra.mxu0 %v1409
    %1455 = vmatprep.subr.bf16.mxu0 0
    %1456 = vmatpush1.bf16.msra.mxu0 %v1410
    %1457 = vmatprep.subr.bf16.mxu0 0
    %1458 = vmatpush1.bf16.msra.mxu0 %v1411
    %1459 = vmatprep.subr.bf16.mxu0 0
    %1460 = vmatpush1.bf16.msra.mxu0 %v1412
    %1461 = vmatprep.mubr.bf16.mxu0 %v1293
    %1462 = vmatmul.mubr.bf16.gmra.mrb[0].mxu0 %v1292
    %v1463 = vpop.f32.mrb[0].mxu0
    %v1464 = vadd.f32 %v1331, %v1463
    %v1465 = vpop.f32.mrb[0].mxu0
    %v1466 = vpop.f32.mrb[0].mxu0
    %v1467 = vpop.f32.mrb[0].mxu0
    %1468 = vdwg.mxu0
    %1469 = vst [vmem:[#allocation10] sm:$0xff] %v1464
    // Predicated region
    $region46: #{tpu_custom_call.1} parent=1 // pred_check
      _
    $region47: #{tpu_custom_call.1} parent=1 // pred_check_branch
      %1471 = sbr.rel (0) target = $region49
    $region48: #{tpu_custom_call.1} parent=1 // pred_region
      %s1473 = ssub.s32 128, 128
      %1474 = vsyncadd [#allocation4], %s1473
      %s1476 = sshll.u32 [#allocation10], 4
      %s1477 = int_to_ptr.vmem [resolvable:$true] %s1476
      %1479 = dma.vmem_to_hbm [thread:$0]  %s1477, 128, %s7, [#allocation4]
    $region49: #{tpu_custom_call.1} parent=1 // pred_fallthru
      _
    // Predicated region
    $region50: #{tpu_custom_call.1} parent=1 // pred_check
      _
    $region51: #{tpu_custom_call.1} parent=1 // pred_check_branch
      %1481 = sbr.rel (0) target = $region53
    $region52: #{tpu_custom_call.1} parent=1 // pred_region
      %1482 = dma.done [#allocation4], 128
    $region53: #{tpu_custom_call.1} parent=1 // pred_fallthru
      _
    %1483 = vsyncpa [#allocation3], 1
    %1484 = vsyncpa [#allocation6], 1
    %1485 = vsyncpa [#allocation9], 1
    %1486 = vsyncpa [#allocation4], 1

</llo_original>
